<compile_context>
chip_gen: v6e
topology: v6e:2x2x1
jax: 0.10.0
libtpu: 0.0.40
codegen_flags: <defaults>
</compile_context>

<pallas_src>
import jax
import jax.numpy as jnp
from jax.experimental import pallas as pl
from jax.experimental.pallas import tpu as pltpu

IN_DIM = 28 * 28            # 784

# Original torch layer dims:
#  encoder: 784 -> 128 -> 64 -> 12 -> 3   (ReLU after all but last)
#  decoder:   3 -> 12  -> 64 -> 128 -> 784 (ReLU between, Tanh at the end)
LAYER_DIMS = [IN_DIM, 128, 64, 12, 3, 12, 64, 128, IN_DIM]
# After folding the activation-free 12->3->12 bottleneck:
FUSED_DIMS = [IN_DIM, 128, 64, 12, 12, 64, 128, IN_DIM]


def _round_up(x, m):
    return ((x + m - 1) // m) * m


def autoencoder_kernel(x_ref,
                       w1, b1, w2, b2, w3, b3, w45, b45,
                       w6, b6, w7, b7, w8, b8,
                       o_ref):
    """One (TB, 784) batch tile of the fused autoencoder forward pass.

    Weights/biases are VMEM-resident (constant index_map); the f32 input tile
    and bf16 output tile stream through the auto-generated pipeline. The bf16
    cast of activations happens in-kernel; matmuls accumulate in f32.
    """

    def lin(h, w_ref, b_ref):
        # bf16 MXU matmul, f32 accumulate, f32 bias add.
        return jnp.dot(h.astype(jnp.bfloat16), w_ref[...],
                       preferred_element_type=jnp.float32) + b_ref[...]

    h = x_ref[...]                                  # (TB, 784) f32 streamed tile
    h = jnp.maximum(lin(h, w1, b1), 0.0)            # 784 -> 128
    h = jnp.maximum(lin(h, w2, b2), 0.0)            # 128 -> 64
    h = jnp.maximum(lin(h, w3, b3), 0.0)            # 64  -> 12
    h = jnp.maximum(lin(h, w45, b45), 0.0)          # folded 12 -> 3 -> 12
    h = jnp.maximum(lin(h, w6, b6), 0.0)            # 12  -> 64
    h = jnp.maximum(lin(h, w7, b7), 0.0)            # 64  -> 128
    h = jnp.tanh(lin(h, w8, b8))                    # 128 -> 784, Tanh
    o_ref[...] = h.astype(o_ref.dtype)              # bf16 store: half the writeback


def init_params(key):
    """Deterministic PyTorch-style init: U(-1/sqrt(fan_in), 1/sqrt(fan_in))."""
    params = []
    for i in range(len(LAYER_DIMS) - 1):
        fan_in, fan_out = LAYER_DIMS[i], LAYER_DIMS[i + 1]
        key, kw, kb = jax.random.split(key, 3)
        bound = 1.0 / jnp.sqrt(jnp.float32(fan_in))
        w = jax.random.uniform(kw, (fan_in, fan_out), jnp.float32, -bound, bound)
        b = jax.random.uniform(kb, (1, fan_out), jnp.float32, -bound, bound)
        params.append((w, b))
    return params


def prepare_params(params):
    """Fold the 12->3->12 bottleneck (exact, no activation between) and cast
    weights to bf16 (fold done in f32 before the cast). Biases stay f32."""
    ws = [w for w, _ in params]
    bs = [b for _, b in params]
    #   relu((x W4 + b4) W5 + b5) == relu(x (W4 W5) + (b4 W5 + b5)).
    w45 = ws[3] @ ws[4]
    b45 = bs[3] @ ws[4] + bs[4]
    ws = [ws[0], ws[1], ws[2], w45, ws[5], ws[6], ws[7]]
    bs = [bs[0], bs[1], bs[2], b45, bs[5], bs[6], bs[7]]
    return [(w.astype(jnp.bfloat16), b.astype(jnp.float32))
            for w, b in zip(ws, bs)]


def autoencoder_forward(x, prepared, *, tb=1024):
    """x: (B, 784) f32; prepared: output of prepare_params(). Returns (B, 784) bf16."""
    B = x.shape[0]
    # Sublane-aligned batch tile; default 1024 but capped so the grid has at
    # least 2 steps (so the "parallel" axis shards across both v7x TCs).
    tb = _round_up(min(tb, B), 8)
    if B > 8:
        tb = min(tb, _round_up((B + 1) // 2, 8))
    b_pad = _round_up(B, tb)
    if b_pad != B:
        # Row padding only; the demo batch avoids this path entirely.
        x = jnp.pad(x, ((0, b_pad - B), (0, 0)))

    flat = []
    # Streamed f32 (tb, 784) input tile: no wrapper pad/cast pre-pass.
    # Last dim 784 equals the full array extent, so the block is legal.
    in_specs = [pl.BlockSpec((tb, IN_DIM), lambda i: (i, 0))]
    for w, b in prepared:
        flat.extend([w, b])
        # Full-extent blocks with a constant index_map: DMA'd once, VMEM-resident.
        # (Single-buffering them via pipeline_mode would save ~0.5 MB more VMEM.)
        in_specs.append(pl.BlockSpec(w.shape, lambda i: (0, 0)))
        in_specs.append(pl.BlockSpec(b.shape, lambda i: (0, 0)))

    grid = (b_pad // tb,)

    flops = 2 * b_pad * sum(d0 * d1 for d0, d1 in zip(FUSED_DIMS[:-1], FUSED_DIMS[1:]))
    bytes_accessed = (b_pad * IN_DIM * x.dtype.itemsize     # streamed f32 input
                      + b_pad * IN_DIM * 2                  # bf16 output stream
                      + sum(w.size * 2 + b.size * 4 for w, b in prepared))
    cost = pl.CostEstimate(flops=flops,
                           transcendentals=b_pad * IN_DIM,  # final tanh
                           bytes_accessed=bytes_accessed)

    out = pl.pallas_call(
        autoencoder_kernel,
        out_shape=jax.ShapeDtypeStruct((b_pad, IN_DIM), jnp.bfloat16),
        grid=grid,
        in_specs=in_specs,
        out_specs=pl.BlockSpec((tb, IN_DIM), lambda i: (i, 0)),
        compiler_params=pltpu.CompilerParams(
            dimension_semantics=("parallel",),        # 2x on v7x (2 TCs)
            vmem_limit_bytes=48 * 1024 * 1024),       # headroom, < v7x 64 MiB
        cost_estimate=cost,
    )(x, *flat)

    if b_pad != B:
        out = out[:B]
    return out


if __name__ == "__main__":
    key = jax.random.PRNGKey(0)
    key, kx = jax.random.split(key)

    B = 64                               # small demo batch (multiple of 8)
    x = jax.random.uniform(kx, (B, IN_DIM), jnp.float32, -1.0, 1.0)

    params = init_params(key)
    prepared = prepare_params(params)

    # tb is capped to 32 here -> grid=(2,) so the streaming pipeline is exercised.
    out = jax.block_until_ready(autoencoder_forward(x, prepared))
    assert out.shape == (B, IN_DIM)
    assert out.dtype == jnp.bfloat16

    # (1) Tight check against a pure-JAX replica of the kernel arithmetic
    #     (bf16 weights/activations, f32 accumulation, fused bottleneck,
    #      bf16 output). bf16 output quantization bounds the tolerance.
    h = x
    acts = [jax.nn.relu] * 6 + [jnp.tanh]
    for (w, b), act in zip(prepared, acts):
        h = act(jnp.dot(h.astype(jnp.bfloat16), w,
                        preferred_element_type=jnp.float32) + b)
    assert jnp.allclose(out.astype(jnp.float32), h, atol=1e-2, rtol=1e-2)

    # (2) Loose semantics check against the original un-fused f32 module math
    #     (bf16 weights/activations/output loosen the tolerance; this is a
    #     deliberate precision tradeoff).
    h = x
    acts8 = [jax.nn.relu, jax.nn.relu, jax.nn.relu, lambda v: v,
             jax.nn.relu, jax.nn.relu, jax.nn.relu, jnp.tanh]
    for (w, b), act in zip(params, acts8):
        h = act(h @ w + b)
    assert jnp.allclose(out.astype(jnp.float32), h, atol=6e-2, rtol=6e-2)

    print("KERNEL_OK")
</pallas_src>

<mosaic_0001>
module attributes {stable_mosaic.version = 11 : i64} {
  func.func @autoencoder_kernel(%arg0: i32, %arg1: memref<32x784xf32, #tpu.memory_space<vmem>>, %arg2: memref<784x128xbf16, #tpu.memory_space<vmem>>, %arg3: memref<1x128xf32, #tpu.memory_space<vmem>>, %arg4: memref<128x64xbf16, #tpu.memory_space<vmem>>, %arg5: memref<1x64xf32, #tpu.memory_space<vmem>>, %arg6: memref<64x12xbf16, #tpu.memory_space<vmem>>, %arg7: memref<1x12xf32, #tpu.memory_space<vmem>>, %arg8: memref<12x12xbf16, #tpu.memory_space<vmem>>, %arg9: memref<1x12xf32, #tpu.memory_space<vmem>>, %arg10: memref<12x64xbf16, #tpu.memory_space<vmem>>, %arg11: memref<1x64xf32, #tpu.memory_space<vmem>>, %arg12: memref<64x128xbf16, #tpu.memory_space<vmem>>, %arg13: memref<1x128xf32, #tpu.memory_space<vmem>>, %arg14: memref<128x784xbf16, #tpu.memory_space<vmem>>, %arg15: memref<1x784xf32, #tpu.memory_space<vmem>>, %arg16: memref<32x784xbf16, #tpu.memory_space<vmem>>) attributes {dimension_semantics = [#tpu.dimension_semantics<parallel>], iteration_bounds = array<i64: 2>, scalar_prefetch = 0 : i64, scratch_operands = 0 : i64, tpu.core_type = #tpu.core_type<tc>, window_params = [{transform_indices = @transform_0, window_bounds = array<i64: 32, 784>}, {pipeline_mode = #tpu.pipeline_mode<synchronous>, transform_indices = @transform_1, window_bounds = array<i64: 784, 128>}, {pipeline_mode = #tpu.pipeline_mode<synchronous>, transform_indices = @transform_2, window_bounds = array<i64: 1, 128>}, {pipeline_mode = #tpu.pipeline_mode<synchronous>, transform_indices = @transform_3, window_bounds = array<i64: 128, 64>}, {pipeline_mode = #tpu.pipeline_mode<synchronous>, transform_indices = @transform_4, window_bounds = array<i64: 1, 64>}, {pipeline_mode = #tpu.pipeline_mode<synchronous>, transform_indices = @transform_5, window_bounds = array<i64: 64, 12>}, {pipeline_mode = #tpu.pipeline_mode<synchronous>, transform_indices = @transform_6, window_bounds = array<i64: 1, 12>}, {pipeline_mode = #tpu.pipeline_mode<synchronous>, transform_indices = @transform_7, window_bounds = array<i64: 12, 12>}, {pipeline_mode = #tpu.pipeline_mode<synchronous>, transform_indices = @transform_8, window_bounds = array<i64: 1, 12>}, {pipeline_mode = #tpu.pipeline_mode<synchronous>, transform_indices = @transform_9, window_bounds = array<i64: 12, 64>}, {pipeline_mode = #tpu.pipeline_mode<synchronous>, transform_indices = @transform_10, window_bounds = array<i64: 1, 64>}, {pipeline_mode = #tpu.pipeline_mode<synchronous>, transform_indices = @transform_11, window_bounds = array<i64: 64, 128>}, {pipeline_mode = #tpu.pipeline_mode<synchronous>, transform_indices = @transform_12, window_bounds = array<i64: 1, 128>}, {pipeline_mode = #tpu.pipeline_mode<synchronous>, transform_indices = @transform_13, window_bounds = array<i64: 128, 784>}, {pipeline_mode = #tpu.pipeline_mode<synchronous>, transform_indices = @transform_14, window_bounds = array<i64: 1, 784>}, {transform_indices = @transform_15, window_bounds = array<i64: 32, 784>}]} {
    %c0 = arith.constant 0 : index
    %c0_0 = arith.constant 0 : index
    %0 = vector.load %arg1[%c0, %c0_0] : memref<32x784xf32, #tpu.memory_space<vmem>>, vector<32x784xf32>
    %1 = arith.truncf %0 : vector<32x784xf32> to vector<32x784xbf16>
    %c0_1 = arith.constant 0 : index
    %c0_2 = arith.constant 0 : index
    %2 = vector.load %arg2[%c0_1, %c0_2] : memref<784x128xbf16, #tpu.memory_space<vmem>>, vector<784x128xbf16>
    %cst = arith.constant dense<0.000000e+00> : vector<32x128xf32>
    %3 = tpu.matmul %1, %2, %cst {dimension_numbers = #tpu.dot_dimension_numbers<[1], [0], [0], [1], [0, 0, 1, 1], [], []>} : vector<32x784xbf16>, vector<784x128xbf16>, vector<32x128xf32> -> vector<32x128xf32>
    %c0_3 = arith.constant 0 : index
    %c0_4 = arith.constant 0 : index
    %4 = vector.load %arg3[%c0_3, %c0_4] : memref<1x128xf32, #tpu.memory_space<vmem>>, vector<1x128xf32>
    %5 = vector.broadcast %4 : vector<1x128xf32> to vector<32x128xf32>
    %6 = arith.addf %3, %5 : vector<32x128xf32>
    %cst_5 = arith.constant 0.000000e+00 : f32
    %7 = vector.broadcast %cst_5 : f32 to vector<32x128xf32>
    %8 = arith.maximumf %6, %7 : vector<32x128xf32>
    %9 = arith.truncf %8 : vector<32x128xf32> to vector<32x128xbf16>
    %c0_6 = arith.constant 0 : index
    %c0_7 = arith.constant 0 : index
    %10 = vector.load %arg4[%c0_6, %c0_7] : memref<128x64xbf16, #tpu.memory_space<vmem>>, vector<128x64xbf16>
    %cst_8 = arith.constant dense<0.000000e+00> : vector<32x64xf32>
    %11 = tpu.matmul %9, %10, %cst_8 {dimension_numbers = #tpu.dot_dimension_numbers<[1], [0], [0], [1], [0, 0, 1, 1], [], []>} : vector<32x128xbf16>, vector<128x64xbf16>, vector<32x64xf32> -> vector<32x64xf32>
    %c0_9 = arith.constant 0 : index
    %c0_10 = arith.constant 0 : index
    %12 = vector.load %arg5[%c0_9, %c0_10] : memref<1x64xf32, #tpu.memory_space<vmem>>, vector<1x64xf32>
    %13 = vector.broadcast %12 : vector<1x64xf32> to vector<32x64xf32>
    %14 = arith.addf %11, %13 : vector<32x64xf32>
    %cst_11 = arith.constant 0.000000e+00 : f32
    %15 = vector.broadcast %cst_11 : f32 to vector<32x64xf32>
    %16 = arith.maximumf %14, %15 : vector<32x64xf32>
    %17 = arith.truncf %16 : vector<32x64xf32> to vector<32x64xbf16>
    %c0_12 = arith.constant 0 : index
    %c0_13 = arith.constant 0 : index
    %18 = vector.load %arg6[%c0_12, %c0_13] : memref<64x12xbf16, #tpu.memory_space<vmem>>, vector<64x12xbf16>
    %cst_14 = arith.constant dense<0.000000e+00> : vector<32x12xf32>
    %19 = tpu.matmul %17, %18, %cst_14 {dimension_numbers = #tpu.dot_dimension_numbers<[1], [0], [0], [1], [0, 0, 1, 1], [], []>} : vector<32x64xbf16>, vector<64x12xbf16>, vector<32x12xf32> -> vector<32x12xf32>
    %c0_15 = arith.constant 0 : index
    %c0_16 = arith.constant 0 : index
    %20 = vector.load %arg7[%c0_15, %c0_16] : memref<1x12xf32, #tpu.memory_space<vmem>>, vector<1x12xf32>
    %21 = vector.broadcast %20 : vector<1x12xf32> to vector<32x12xf32>
    %22 = arith.addf %19, %21 : vector<32x12xf32>
    %cst_17 = arith.constant 0.000000e+00 : f32
    %23 = vector.broadcast %cst_17 : f32 to vector<32x12xf32>
    %24 = arith.maximumf %22, %23 : vector<32x12xf32>
    %25 = arith.truncf %24 : vector<32x12xf32> to vector<32x12xbf16>
    %c0_18 = arith.constant 0 : index
    %c0_19 = arith.constant 0 : index
    %26 = vector.load %arg8[%c0_18, %c0_19] : memref<12x12xbf16, #tpu.memory_space<vmem>>, vector<12x12xbf16>
    %cst_20 = arith.constant dense<0.000000e+00> : vector<32x12xf32>
    %27 = tpu.matmul %25, %26, %cst_20 {dimension_numbers = #tpu.dot_dimension_numbers<[1], [0], [0], [1], [0, 0, 1, 1], [], []>} : vector<32x12xbf16>, vector<12x12xbf16>, vector<32x12xf32> -> vector<32x12xf32>
    %c0_21 = arith.constant 0 : index
    %c0_22 = arith.constant 0 : index
    %28 = vector.load %arg9[%c0_21, %c0_22] : memref<1x12xf32, #tpu.memory_space<vmem>>, vector<1x12xf32>
    %29 = vector.broadcast %28 : vector<1x12xf32> to vector<32x12xf32>
    %30 = arith.addf %27, %29 : vector<32x12xf32>
    %cst_23 = arith.constant 0.000000e+00 : f32
    %31 = vector.broadcast %cst_23 : f32 to vector<32x12xf32>
    %32 = arith.maximumf %30, %31 : vector<32x12xf32>
    %33 = arith.truncf %32 : vector<32x12xf32> to vector<32x12xbf16>
    %c0_24 = arith.constant 0 : index
    %c0_25 = arith.constant 0 : index
    %34 = vector.load %arg10[%c0_24, %c0_25] : memref<12x64xbf16, #tpu.memory_space<vmem>>, vector<12x64xbf16>
    %cst_26 = arith.constant dense<0.000000e+00> : vector<32x64xf32>
    %35 = tpu.matmul %33, %34, %cst_26 {dimension_numbers = #tpu.dot_dimension_numbers<[1], [0], [0], [1], [0, 0, 1, 1], [], []>} : vector<32x12xbf16>, vector<12x64xbf16>, vector<32x64xf32> -> vector<32x64xf32>
    %c0_27 = arith.constant 0 : index
    %c0_28 = arith.constant 0 : index
    %36 = vector.load %arg11[%c0_27, %c0_28] : memref<1x64xf32, #tpu.memory_space<vmem>>, vector<1x64xf32>
    %37 = vector.broadcast %36 : vector<1x64xf32> to vector<32x64xf32>
    %38 = arith.addf %35, %37 : vector<32x64xf32>
    %cst_29 = arith.constant 0.000000e+00 : f32
    %39 = vector.broadcast %cst_29 : f32 to vector<32x64xf32>
    %40 = arith.maximumf %38, %39 : vector<32x64xf32>
    %41 = arith.truncf %40 : vector<32x64xf32> to vector<32x64xbf16>
    %c0_30 = arith.constant 0 : index
    %c0_31 = arith.constant 0 : index
    %42 = vector.load %arg12[%c0_30, %c0_31] : memref<64x128xbf16, #tpu.memory_space<vmem>>, vector<64x128xbf16>
    %cst_32 = arith.constant dense<0.000000e+00> : vector<32x128xf32>
    %43 = tpu.matmul %41, %42, %cst_32 {dimension_numbers = #tpu.dot_dimension_numbers<[1], [0], [0], [1], [0, 0, 1, 1], [], []>} : vector<32x64xbf16>, vector<64x128xbf16>, vector<32x128xf32> -> vector<32x128xf32>
    %c0_33 = arith.constant 0 : index
    %c0_34 = arith.constant 0 : index
    %44 = vector.load %arg13[%c0_33, %c0_34] : memref<1x128xf32, #tpu.memory_space<vmem>>, vector<1x128xf32>
    %45 = vector.broadcast %44 : vector<1x128xf32> to vector<32x128xf32>
    %46 = arith.addf %43, %45 : vector<32x128xf32>
    %cst_35 = arith.constant 0.000000e+00 : f32
    %47 = vector.broadcast %cst_35 : f32 to vector<32x128xf32>
    %48 = arith.maximumf %46, %47 : vector<32x128xf32>
    %49 = arith.truncf %48 : vector<32x128xf32> to vector<32x128xbf16>
    %c0_36 = arith.constant 0 : index
    %c0_37 = arith.constant 0 : index
    %50 = vector.load %arg14[%c0_36, %c0_37] : memref<128x784xbf16, #tpu.memory_space<vmem>>, vector<128x784xbf16>
    %cst_38 = arith.constant dense<0.000000e+00> : vector<32x784xf32>
    %51 = tpu.matmul %49, %50, %cst_38 {dimension_numbers = #tpu.dot_dimension_numbers<[1], [0], [0], [1], [0, 0, 1, 1], [], []>} : vector<32x128xbf16>, vector<128x784xbf16>, vector<32x784xf32> -> vector<32x784xf32>
    %c0_39 = arith.constant 0 : index
    %c0_40 = arith.constant 0 : index
    %52 = vector.load %arg15[%c0_39, %c0_40] : memref<1x784xf32, #tpu.memory_space<vmem>>, vector<1x784xf32>
    %53 = vector.broadcast %52 : vector<1x784xf32> to vector<32x784xf32>
    %54 = arith.addf %51, %53 : vector<32x784xf32>
    %55 = math.tanh %54 : vector<32x784xf32>
    %56 = arith.truncf %55 : vector<32x784xf32> to vector<32x784xbf16>
    %c0_41 = arith.constant 0 : index
    %c0_42 = arith.constant 0 : index
    %57 = vector.load %arg16[%c0_41, %c0_42] : memref<32x784xbf16, #tpu.memory_space<vmem>>, vector<32x784xbf16>
    tpu.vector_store %arg16[%c0_41, %c0_42], %56 {strides = array<i32>} : memref<32x784xbf16, #tpu.memory_space<vmem>>, vector<32x784xbf16>,
    return
  }
  func.func @transform_0(%arg0: i32) -> (i32, i32) {
    %c0_i32 = arith.constant 0 : i32
    %c0_i32_0 = arith.constant 0 : i32
    return %arg0, %c0_i32 : i32, i32
  }
  func.func @transform_1(%arg0: i32) -> (i32, i32) {
    %c0_i32 = arith.constant 0 : i32
    %c0_i32_0 = arith.constant 0 : i32
    %c0_i32_1 = arith.constant 0 : i32
    return %c0_i32, %c0_i32_0 : i32, i32
  }
  func.func @transform_2(%arg0: i32) -> (i32, i32) {
    %c0_i32 = arith.constant 0 : i32
    %c0_i32_0 = arith.constant 0 : i32
    %c0_i32_1 = arith.constant 0 : i32
    return %c0_i32, %c0_i32_0 : i32, i32
  }
  func.func @transform_3(%arg0: i32) -> (i32, i32) {
    %c0_i32 = arith.constant 0 : i32
    %c0_i32_0 = arith.constant 0 : i32
    %c0_i32_1 = arith.constant 0 : i32
    return %c0_i32, %c0_i32_0 : i32, i32
  }
  func.func @transform_4(%arg0: i32) -> (i32, i32) {
    %c0_i32 = arith.constant 0 : i32
    %c0_i32_0 = arith.constant 0 : i32
    %c0_i32_1 = arith.constant 0 : i32
    return %c0_i32, %c0_i32_0 : i32, i32
  }
  func.func @transform_5(%arg0: i32) -> (i32, i32) {
    %c0_i32 = arith.constant 0 : i32
    %c0_i32_0 = arith.constant 0 : i32
    %c0_i32_1 = arith.constant 0 : i32
    return %c0_i32, %c0_i32_0 : i32, i32
  }
  func.func @transform_6(%arg0: i32) -> (i32, i32) {
    %c0_i32 = arith.constant 0 : i32
    %c0_i32_0 = arith.constant 0 : i32
    %c0_i32_1 = arith.constant 0 : i32
    return %c0_i32, %c0_i32_0 : i32, i32
  }
  func.func @transform_7(%arg0: i32) -> (i32, i32) {
    %c0_i32 = arith.constant 0 : i32
    %c0_i32_0 = arith.constant 0 : i32
    %c0_i32_1 = arith.constant 0 : i32
    return %c0_i32, %c0_i32_0 : i32, i32
  }
  func.func @transform_8(%arg0: i32) -> (i32, i32) {
    %c0_i32 = arith.constant 0 : i32
    %c0_i32_0 = arith.constant 0 : i32
    %c0_i32_1 = arith.constant 0 : i32
    return %c0_i32, %c0_i32_0 : i32, i32
  }
  func.func @transform_9(%arg0: i32) -> (i32, i32) {
    %c0_i32 = arith.constant 0 : i32
    %c0_i32_0 = arith.constant 0 : i32
    %c0_i32_1 = arith.constant 0 : i32
    return %c0_i32, %c0_i32_0 : i32, i32
  }
  func.func @transform_10(%arg0: i32) -> (i32, i32) {
    %c0_i32 = arith.constant 0 : i32
    %c0_i32_0 = arith.constant 0 : i32
    %c0_i32_1 = arith.constant 0 : i32
    return %c0_i32, %c0_i32_0 : i32, i32
  }
  func.func @transform_11(%arg0: i32) -> (i32, i32) {
    %c0_i32 = arith.constant 0 : i32
    %c0_i32_0 = arith.constant 0 : i32
    %c0_i32_1 = arith.constant 0 : i32
    return %c0_i32, %c0_i32_0 : i32, i32
  }
  func.func @transform_12(%arg0: i32) -> (i32, i32) {
    %c0_i32 = arith.constant 0 : i32
    %c0_i32_0 = arith.constant 0 : i32
    %c0_i32_1 = arith.constant 0 : i32
    return %c0_i32, %c0_i32_0 : i32, i32
  }
  func.func @transform_13(%arg0: i32) -> (i32, i32) {
    %c0_i32 = arith.constant 0 : i32
    %c0_i32_0 = arith.constant 0 : i32
    %c0_i32_1 = arith.constant 0 : i32
    return %c0_i32, %c0_i32_0 : i32, i32
  }
  func.func @transform_14(%arg0: i32) -> (i32, i32) {
    %c0_i32 = arith.constant 0 : i32
    %c0_i32_0 = arith.constant 0 : i32
    %c0_i32_1 = arith.constant 0 : i32
    return %c0_i32, %c0_i32_0 : i32, i32
  }
  func.func @transform_15(%arg0: i32) -> (i32, i32) {
    %c0_i32 = arith.constant 0 : i32
    %c0_i32_0 = arith.constant 0 : i32
    return %arg0, %c0_i32 : i32, i32
  }
}

</mosaic_0001>

<llo_original>
// kernel: tpu_custom_call.1
$region0: #{tpu_custom_call.1}
  #allocation0 [shape = 'u32[]', space=smem, size = 0x4, offset = 0x4, fixed_abs, tag = 'smem constant byte address 0x4 - core index']
  #allocation1 [shape = 'u32[144,128]{1,0:T(1,128)}', space=vmem, size = 0x12000, scoped, tag = 'internal scratch']
  %s0 = inlined_call_operand.vmem [shape: f32[64,784], index: 0, kind: input, shape index: {}]
  %s1 = inlined_call_operand.vmem [shape: bf16[784,128], index: 1, kind: input, shape index: {}]
  %s2 = inlined_call_operand.vmem [shape: f32[1,128], index: 2, kind: input, shape index: {}]
  %s3 = inlined_call_operand.vmem [shape: bf16[128,64], index: 3, kind: input, shape index: {}]
  %s4 = inlined_call_operand.vmem [shape: f32[1,64], index: 4, kind: input, shape index: {}]
  %s5 = inlined_call_operand.vmem [shape: bf16[64,12], index: 5, kind: input, shape index: {}]
  %s6 = inlined_call_operand.vmem [shape: f32[1,12], index: 6, kind: input, shape index: {}]
  %s7 = inlined_call_operand.vmem [shape: bf16[12,12], index: 7, kind: input, shape index: {}]
  %s8 = inlined_call_operand.vmem [shape: f32[1,12], index: 8, kind: input, shape index: {}]
  %s9 = inlined_call_operand.vmem [shape: bf16[12,64], index: 9, kind: input, shape index: {}]
  %s10 = inlined_call_operand.vmem [shape: f32[1,64], index: 10, kind: input, shape index: {}]
  %s11 = inlined_call_operand.vmem [shape: bf16[64,128], index: 11, kind: input, shape index: {}]
  %s12 = inlined_call_operand.vmem [shape: f32[1,128], index: 12, kind: input, shape index: {}]
  %s13 = inlined_call_operand.vmem [shape: bf16[128,784], index: 13, kind: input, shape index: {}]
  %s14 = inlined_call_operand.vmem [shape: f32[1,784], index: 14, kind: input, shape index: {}]
  %s15 = inlined_call_operand.hbm [shape: bf16[64,784], index: 15, kind: output, shape index: {}]
  %s16 = sld [smem:[#allocation0]]
  $region93: #{tpu_custom_call.1} parent=0
    _
  %s18 = ssub.s32 1, %s16
  %s19 = scalar_select 0, %s18, %s16
  $region1: #{tpu_custom_call.1} parent=0
    #allocation2 [shape = 'u8[114688]{0}', space=vmem, size = 0x1c000, scoped, tag = 'output window, operand 0']
    #allocation3 [shape = 's32[2]{0}', space=sflag, size = 0x8, scoped, tag = 'scoped memory for tpu_custom_call.1']
    %20 = vsyncpa [#allocation3], 0
    %s21 = scalar_lea.sflag [#allocation3], 1
    %22 = vsyncpa %s21, 0
    loop: start=0, step=1, limit=4
    $region2: #{tpu_custom_call.1} parent=1 // loop_pre_header
      _
    $region3: #{tpu_custom_call.1} parent=1 // loop_header
      %s24 = sphi 0, %s28
      %p25 = scmp.ge.s32.totalorder %s24, 4
      %s34 = sphi 0, %s36
      %s37 = sphi 0, %s34
      %s38 = sphi 0, %s37
      %s54 = sphi 0, %s38
      %s58 = sphi 0, %s58
      %s60 = sphi 0, %s58
      %s61 = sphi 0, %s60
      %s75 = sphi 0, %s61
      %s79 = sphi 0, %s79
      %s81 = sphi 0, %s79
      %s82 = sphi 0, %s81
      %s96 = sphi 0, %s82
      %s100 = sphi 0, %s100
      %s102 = sphi 0, %s100
      %s103 = sphi 0, %s102
      %s117 = sphi 0, %s103
      %s121 = sphi 0, %s121
      %s123 = sphi 0, %s121
      %s124 = sphi 0, %s123
      %s138 = sphi 0, %s124
      %s142 = sphi 0, %s142
      %s144 = sphi 0, %s142
      %s145 = sphi 0, %s144
      %s159 = sphi 0, %s145
      %s163 = sphi 0, %s163
      %s165 = sphi 0, %s163
      %s166 = sphi 0, %s165
      %s180 = sphi 0, %s166
      %s184 = sphi 0, %s184
      %s186 = sphi 0, %s184
      %s187 = sphi 0, %s186
      %s201 = sphi 0, %s187
      %s205 = sphi 0, %s205
      %s207 = sphi 0, %s205
      %s208 = sphi 0, %s207
      %s222 = sphi 0, %s208
      %s226 = sphi 0, %s226
      %s228 = sphi 0, %s226
      %s229 = sphi 0, %s228
      %s243 = sphi 0, %s229
      %s247 = sphi 0, %s247
      %s249 = sphi 0, %s247
      %s250 = sphi 0, %s249
      %s264 = sphi 0, %s250
      %s268 = sphi 0, %s268
      %s270 = sphi 0, %s268
      %s271 = sphi 0, %s270
      %s285 = sphi 0, %s271
      %s289 = sphi 0, %s289
      %s291 = sphi 0, %s289
      %s292 = sphi 0, %s291
      %s306 = sphi 0, %s292
      %s310 = sphi 0, %s310
      %s312 = sphi 0, %s310
      %s313 = sphi 0, %s312
      %s327 = sphi 0, %s313
      %s331 = sphi 0, %s331
      %s333 = sphi 0, %s331
      %s334 = sphi 0, %s333
      %s348 = sphi 0, %s334
      %s354 = sphi 0, %s356
      %s357 = sphi 0, %s354
      %s358 = sphi 0, %s357
      %s374 = sphi 0, %s358
    $region4: #{tpu_custom_call.1} parent=1 // loop_header_branch
      %27 = sbr.rel (%p25) target = $region8
    $region5: #{tpu_custom_call.1} parent=1 // loop_body
      %s29 = ssub.s32 %s24, 1
      %s30 = ssub.s32 %s24, 2
      %s31 = sadd.s32 %s24, 1
      %s32 = ssub.s32 %s24, %s31
      %p33 = scmp.eq.s32.totalorder %s32, 0
      %s35 = sadd.s32 %s34, 1
      %s36 = scalar_select %p33, %s34, %s35
      %p39 = pneg %p33
      %p40 = scmp.eq.s32.totalorder %s24, 1
      %p41 = por %p39, %p40
      %p42 = scmp.ne.s32.totalorder %s34, %s37
      %p43 = scmp.eq.s32.totalorder %s24, 0
      %p44 = por %p42, %p43
      %p45 = scmp.ne.s32.totalorder %s34, %s37
      %p46 = scmp.eq.s32.totalorder %s29, 1
      %p47 = por %p45, %p46
      %p48 = scmp.ne.s32.totalorder %s37, %s38
      %p49 = scmp.eq.s32.totalorder %s29, 0
      %p50 = por %p48, %p49
      %p51 = scmp.ne.s32.totalorder %s37, %s38
      %p52 = scmp.eq.s32.totalorder %s30, 1
      %p53 = por %p51, %p52
      %p55 = scmp.ne.s32.totalorder %s38, %s54
      %p56 = scmp.eq.s32.totalorder %s30, 0
      %p57 = por %p55, %p56
      %s59 = sadd.s32 %s58, 1
      %p62 = scmp.eq.s32.totalorder %s24, 1
      %p63 = scmp.ne.s32.totalorder %s58, %s60
      %p64 = scmp.eq.s32.totalorder %s24, 0
      %p65 = por %p63, %p64
      %p66 = scmp.ne.s32.totalorder %s58, %s60
      %p67 = scmp.eq.s32.totalorder %s29, 1
      %p68 = por %p66, %p67
      %p69 = scmp.ne.s32.totalorder %s60, %s61
      %p70 = scmp.eq.s32.totalorder %s29, 0
      %p71 = por %p69, %p70
      %p72 = scmp.ne.s32.totalorder %s60, %s61
      %p73 = scmp.eq.s32.totalorder %s30, 1
      %p74 = por %p72, %p73
      %p76 = scmp.ne.s32.totalorder %s61, %s75
      %p77 = scmp.eq.s32.totalorder %s30, 0
      %p78 = por %p76, %p77
      %s80 = sadd.s32 %s79, 1
      %p83 = scmp.eq.s32.totalorder %s24, 1
      %p84 = scmp.ne.s32.totalorder %s79, %s81
      %p85 = scmp.eq.s32.totalorder %s24, 0
      %p86 = por %p84, %p85
      %p87 = scmp.ne.s32.totalorder %s79, %s81
      %p88 = scmp.eq.s32.totalorder %s29, 1
      %p89 = por %p87, %p88
      %p90 = scmp.ne.s32.totalorder %s81, %s82
      %p91 = scmp.eq.s32.totalorder %s29, 0
      %p92 = por %p90, %p91
      %p93 = scmp.ne.s32.totalorder %s81, %s82
      %p94 = scmp.eq.s32.totalorder %s30, 1
      %p95 = por %p93, %p94
      %p97 = scmp.ne.s32.totalorder %s82, %s96
      %p98 = scmp.eq.s32.totalorder %s30, 0
      %p99 = por %p97, %p98
      %s101 = sadd.s32 %s100, 1
      %p104 = scmp.eq.s32.totalorder %s24, 1
      %p105 = scmp.ne.s32.totalorder %s100, %s102
      %p106 = scmp.eq.s32.totalorder %s24, 0
      %p107 = por %p105, %p106
      %p108 = scmp.ne.s32.totalorder %s100, %s102
      %p109 = scmp.eq.s32.totalorder %s29, 1
      %p110 = por %p108, %p109
      %p111 = scmp.ne.s32.totalorder %s102, %s103
      %p112 = scmp.eq.s32.totalorder %s29, 0
      %p113 = por %p111, %p112
      %p114 = scmp.ne.s32.totalorder %s102, %s103
      %p115 = scmp.eq.s32.totalorder %s30, 1
      %p116 = por %p114, %p115
      %p118 = scmp.ne.s32.totalorder %s103, %s117
      %p119 = scmp.eq.s32.totalorder %s30, 0
      %p120 = por %p118, %p119
      %s122 = sadd.s32 %s121, 1
      %p125 = scmp.eq.s32.totalorder %s24, 1
      %p126 = scmp.ne.s32.totalorder %s121, %s123
      %p127 = scmp.eq.s32.totalorder %s24, 0
      %p128 = por %p126, %p127
      %p129 = scmp.ne.s32.totalorder %s121, %s123
      %p130 = scmp.eq.s32.totalorder %s29, 1
      %p131 = por %p129, %p130
      %p132 = scmp.ne.s32.totalorder %s123, %s124
      %p133 = scmp.eq.s32.totalorder %s29, 0
      %p134 = por %p132, %p133
      %p135 = scmp.ne.s32.totalorder %s123, %s124
      %p136 = scmp.eq.s32.totalorder %s30, 1
      %p137 = por %p135, %p136
      %p139 = scmp.ne.s32.totalorder %s124, %s138
      %p140 = scmp.eq.s32.totalorder %s30, 0
      %p141 = por %p139, %p140
      %s143 = sadd.s32 %s142, 1
      %p146 = scmp.eq.s32.totalorder %s24, 1
      %p147 = scmp.ne.s32.totalorder %s142, %s144
      %p148 = scmp.eq.s32.totalorder %s24, 0
      %p149 = por %p147, %p148
      %p150 = scmp.ne.s32.totalorder %s142, %s144
      %p151 = scmp.eq.s32.totalorder %s29, 1
      %p152 = por %p150, %p151
      %p153 = scmp.ne.s32.totalorder %s144, %s145
      %p154 = scmp.eq.s32.totalorder %s29, 0
      %p155 = por %p153, %p154
      %p156 = scmp.ne.s32.totalorder %s144, %s145
      %p157 = scmp.eq.s32.totalorder %s30, 1
      %p158 = por %p156, %p157
      %p160 = scmp.ne.s32.totalorder %s145, %s159
      %p161 = scmp.eq.s32.totalorder %s30, 0
      %p162 = por %p160, %p161
      %s164 = sadd.s32 %s163, 1
      %p167 = scmp.eq.s32.totalorder %s24, 1
      %p168 = scmp.ne.s32.totalorder %s163, %s165
      %p169 = scmp.eq.s32.totalorder %s24, 0
      %p170 = por %p168, %p169
      %p171 = scmp.ne.s32.totalorder %s163, %s165
      %p172 = scmp.eq.s32.totalorder %s29, 1
      %p173 = por %p171, %p172
      %p174 = scmp.ne.s32.totalorder %s165, %s166
      %p175 = scmp.eq.s32.totalorder %s29, 0
      %p176 = por %p174, %p175
      %p177 = scmp.ne.s32.totalorder %s165, %s166
      %p178 = scmp.eq.s32.totalorder %s30, 1
      %p179 = por %p177, %p178
      %p181 = scmp.ne.s32.totalorder %s166, %s180
      %p182 = scmp.eq.s32.totalorder %s30, 0
      %p183 = por %p181, %p182
      %s185 = sadd.s32 %s184, 1
      %p188 = scmp.eq.s32.totalorder %s24, 1
      %p189 = scmp.ne.s32.totalorder %s184, %s186
      %p190 = scmp.eq.s32.totalorder %s24, 0
      %p191 = por %p189, %p190
      %p192 = scmp.ne.s32.totalorder %s184, %s186
      %p193 = scmp.eq.s32.totalorder %s29, 1
      %p194 = por %p192, %p193
      %p195 = scmp.ne.s32.totalorder %s186, %s187
      %p196 = scmp.eq.s32.totalorder %s29, 0
      %p197 = por %p195, %p196
      %p198 = scmp.ne.s32.totalorder %s186, %s187
      %p199 = scmp.eq.s32.totalorder %s30, 1
      %p200 = por %p198, %p199
      %p202 = scmp.ne.s32.totalorder %s187, %s201
      %p203 = scmp.eq.s32.totalorder %s30, 0
      %p204 = por %p202, %p203
      %s206 = sadd.s32 %s205, 1
      %p209 = scmp.eq.s32.totalorder %s24, 1
      %p210 = scmp.ne.s32.totalorder %s205, %s207
      %p211 = scmp.eq.s32.totalorder %s24, 0
      %p212 = por %p210, %p211
      %p213 = scmp.ne.s32.totalorder %s205, %s207
      %p214 = scmp.eq.s32.totalorder %s29, 1
      %p215 = por %p213, %p214
      %p216 = scmp.ne.s32.totalorder %s207, %s208
      %p217 = scmp.eq.s32.totalorder %s29, 0
      %p218 = por %p216, %p217
      %p219 = scmp.ne.s32.totalorder %s207, %s208
      %p220 = scmp.eq.s32.totalorder %s30, 1
      %p221 = por %p219, %p220
      %p223 = scmp.ne.s32.totalorder %s208, %s222
      %p224 = scmp.eq.s32.totalorder %s30, 0
      %p225 = por %p223, %p224
      %s227 = sadd.s32 %s226, 1
      %p230 = scmp.eq.s32.totalorder %s24, 1
      %p231 = scmp.ne.s32.totalorder %s226, %s228
      %p232 = scmp.eq.s32.totalorder %s24, 0
      %p233 = por %p231, %p232
      %p234 = scmp.ne.s32.totalorder %s226, %s228
      %p235 = scmp.eq.s32.totalorder %s29, 1
      %p236 = por %p234, %p235
      %p237 = scmp.ne.s32.totalorder %s228, %s229
      %p238 = scmp.eq.s32.totalorder %s29, 0
      %p239 = por %p237, %p238
      %p240 = scmp.ne.s32.totalorder %s228, %s229
      %p241 = scmp.eq.s32.totalorder %s30, 1
      %p242 = por %p240, %p241
      %p244 = scmp.ne.s32.totalorder %s229, %s243
      %p245 = scmp.eq.s32.totalorder %s30, 0
      %p246 = por %p244, %p245
      %s248 = sadd.s32 %s247, 1
      %p251 = scmp.eq.s32.totalorder %s24, 1
      %p252 = scmp.ne.s32.totalorder %s247, %s249
      %p253 = scmp.eq.s32.totalorder %s24, 0
      %p254 = por %p252, %p253
      %p255 = scmp.ne.s32.totalorder %s247, %s249
      %p256 = scmp.eq.s32.totalorder %s29, 1
      %p257 = por %p255, %p256
      %p258 = scmp.ne.s32.totalorder %s249, %s250
      %p259 = scmp.eq.s32.totalorder %s29, 0
      %p260 = por %p258, %p259
      %p261 = scmp.ne.s32.totalorder %s249, %s250
      %p262 = scmp.eq.s32.totalorder %s30, 1
      %p263 = por %p261, %p262
      %p265 = scmp.ne.s32.totalorder %s250, %s264
      %p266 = scmp.eq.s32.totalorder %s30, 0
      %p267 = por %p265, %p266
      %s269 = sadd.s32 %s268, 1
      %p272 = scmp.eq.s32.totalorder %s24, 1
      %p273 = scmp.ne.s32.totalorder %s268, %s270
      %p274 = scmp.eq.s32.totalorder %s24, 0
      %p275 = por %p273, %p274
      %p276 = scmp.ne.s32.totalorder %s268, %s270
      %p277 = scmp.eq.s32.totalorder %s29, 1
      %p278 = por %p276, %p277
      %p279 = scmp.ne.s32.totalorder %s270, %s271
      %p280 = scmp.eq.s32.totalorder %s29, 0
      %p281 = por %p279, %p280
      %p282 = scmp.ne.s32.totalorder %s270, %s271
      %p283 = scmp.eq.s32.totalorder %s30, 1
      %p284 = por %p282, %p283
      %p286 = scmp.ne.s32.totalorder %s271, %s285
      %p287 = scmp.eq.s32.totalorder %s30, 0
      %p288 = por %p286, %p287
      %s290 = sadd.s32 %s289, 1
      %p293 = scmp.eq.s32.totalorder %s24, 1
      %p294 = scmp.ne.s32.totalorder %s289, %s291
      %p295 = scmp.eq.s32.totalorder %s24, 0
      %p296 = por %p294, %p295
      %p297 = scmp.ne.s32.totalorder %s289, %s291
      %p298 = scmp.eq.s32.totalorder %s29, 1
      %p299 = por %p297, %p298
      %p300 = scmp.ne.s32.totalorder %s291, %s292
      %p301 = scmp.eq.s32.totalorder %s29, 0
      %p302 = por %p300, %p301
      %p303 = scmp.ne.s32.totalorder %s291, %s292
      %p304 = scmp.eq.s32.totalorder %s30, 1
      %p305 = por %p303, %p304
      %p307 = scmp.ne.s32.totalorder %s292, %s306
      %p308 = scmp.eq.s32.totalorder %s30, 0
      %p309 = por %p307, %p308
      %s311 = sadd.s32 %s310, 1
      %p314 = scmp.eq.s32.totalorder %s24, 1
      %p315 = scmp.ne.s32.totalorder %s310, %s312
      %p316 = scmp.eq.s32.totalorder %s24, 0
      %p317 = por %p315, %p316
      %p318 = scmp.ne.s32.totalorder %s310, %s312
      %p319 = scmp.eq.s32.totalorder %s29, 1
      %p320 = por %p318, %p319
      %p321 = scmp.ne.s32.totalorder %s312, %s313
      %p322 = scmp.eq.s32.totalorder %s29, 0
      %p323 = por %p321, %p322
      %p324 = scmp.ne.s32.totalorder %s312, %s313
      %p325 = scmp.eq.s32.totalorder %s30, 1
      %p326 = por %p324, %p325
      %p328 = scmp.ne.s32.totalorder %s313, %s327
      %p329 = scmp.eq.s32.totalorder %s30, 0
      %p330 = por %p328, %p329
      %s332 = sadd.s32 %s331, 1
      %p335 = scmp.eq.s32.totalorder %s24, 1
      %p336 = scmp.ne.s32.totalorder %s331, %s333
      %p337 = scmp.eq.s32.totalorder %s24, 0
      %p338 = por %p336, %p337
      %p339 = scmp.ne.s32.totalorder %s331, %s333
      %p340 = scmp.eq.s32.totalorder %s29, 1
      %p341 = por %p339, %p340
      %p342 = scmp.ne.s32.totalorder %s333, %s334
      %p343 = scmp.eq.s32.totalorder %s29, 0
      %p344 = por %p342, %p343
      %p345 = scmp.ne.s32.totalorder %s333, %s334
      %p346 = scmp.eq.s32.totalorder %s30, 1
      %p347 = por %p345, %p346
      %p349 = scmp.ne.s32.totalorder %s334, %s348
      %p350 = scmp.eq.s32.totalorder %s30, 0
      %p351 = por %p349, %p350
      %s352 = ssub.s32 %s24, %s31
      %p353 = scmp.eq.s32.totalorder %s352, 0
      %s355 = sadd.s32 %s354, 1
      %s356 = scalar_select %p353, %s354, %s355
      %p359 = pneg %p353
      %p360 = scmp.eq.s32.totalorder %s24, 1
      %p361 = por %p359, %p360
      %p362 = scmp.ne.s32.totalorder %s354, %s357
      %p363 = scmp.eq.s32.totalorder %s24, 0
      %p364 = por %p362, %p363
      %p365 = scmp.ne.s32.totalorder %s354, %s357
      %p366 = scmp.eq.s32.totalorder %s29, 1
      %p367 = por %p365, %p366
      %p368 = scmp.ne.s32.totalorder %s357, %s358
      %p369 = scmp.eq.s32.totalorder %s29, 0
      %p370 = por %p368, %p369
      %p371 = scmp.ne.s32.totalorder %s357, %s358
      %p372 = scmp.eq.s32.totalorder %s30, 1
      %p373 = por %p371, %p372
      %p375 = scmp.ne.s32.totalorder %s358, %s374
      %p376 = scmp.eq.s32.totalorder %s30, 0
      %p377 = por %p375, %p376
      %p378 = scmp.le.s32.totalorder 1, %s24
      %p379 = scmp.lt.s32.totalorder %s24, 3
      %p380 = pnand %p378, %p379
      %p381 = pneg %p380
      // Predicated region
      $region9: #{tpu_custom_call.1} parent=5 // pred_check
        _
      $region10: #{tpu_custom_call.1} parent=5 // pred_check_branch
        %383 = sbr.rel (%p380) target = $region12
      $region11: #{tpu_custom_call.1} parent=5 // pred_region
        %s384 = ssub.s32 %s24, 1
        // Predicated region
        $region13: #{tpu_custom_call.1} parent=11 // pred_check
          %p385 = pneg %p71
        $region14: #{tpu_custom_call.1} parent=11 // pred_check_branch
          %387 = sbr.rel (%p385) target = $region16
        $region15: #{tpu_custom_call.1} parent=11 // pred_region
          _
        $region16: #{tpu_custom_call.1} parent=11 // pred_fallthru
          _
        // Predicated region
        $region17: #{tpu_custom_call.1} parent=11 // pred_check
          %p388 = pneg %p92
        $region18: #{tpu_custom_call.1} parent=11 // pred_check_branch
          %390 = sbr.rel (%p388) target = $region20
        $region19: #{tpu_custom_call.1} parent=11 // pred_region
          _
        $region20: #{tpu_custom_call.1} parent=11 // pred_fallthru
          _
        // Predicated region
        $region21: #{tpu_custom_call.1} parent=11 // pred_check
          %p391 = pneg %p113
        $region22: #{tpu_custom_call.1} parent=11 // pred_check_branch
          %393 = sbr.rel (%p391) target = $region24
        $region23: #{tpu_custom_call.1} parent=11 // pred_region
          _
        $region24: #{tpu_custom_call.1} parent=11 // pred_fallthru
          _
        // Predicated region
        $region25: #{tpu_custom_call.1} parent=11 // pred_check
          %p394 = pneg %p134
        $region26: #{tpu_custom_call.1} parent=11 // pred_check_branch
          %396 = sbr.rel (%p394) target = $region28
        $region27: #{tpu_custom_call.1} parent=11 // pred_region
          _
        $region28: #{tpu_custom_call.1} parent=11 // pred_fallthru
          _
        // Predicated region
        $region29: #{tpu_custom_call.1} parent=11 // pred_check
          %p397 = pneg %p155
        $region30: #{tpu_custom_call.1} parent=11 // pred_check_branch
          %399 = sbr.rel (%p397) target = $region32
        $region31: #{tpu_custom_call.1} parent=11 // pred_region
          _
        $region32: #{tpu_custom_call.1} parent=11 // pred_fallthru
          _
        // Predicated region
        $region33: #{tpu_custom_call.1} parent=11 // pred_check
          %p400 = pneg %p176
        $region34: #{tpu_custom_call.1} parent=11 // pred_check_branch
          %402 = sbr.rel (%p400) target = $region36
        $region35: #{tpu_custom_call.1} parent=11 // pred_region
          _
        $region36: #{tpu_custom_call.1} parent=11 // pred_fallthru
          _
        // Predicated region
        $region37: #{tpu_custom_call.1} parent=11 // pred_check
          %p403 = pneg %p197
        $region38: #{tpu_custom_call.1} parent=11 // pred_check_branch
          %405 = sbr.rel (%p403) target = $region40
        $region39: #{tpu_custom_call.1} parent=11 // pred_region
          _
        $region40: #{tpu_custom_call.1} parent=11 // pred_fallthru
          _
        // Predicated region
        $region41: #{tpu_custom_call.1} parent=11 // pred_check
          %p406 = pneg %p218
        $region42: #{tpu_custom_call.1} parent=11 // pred_check_branch
          %408 = sbr.rel (%p406) target = $region44
        $region43: #{tpu_custom_call.1} parent=11 // pred_region
          _
        $region44: #{tpu_custom_call.1} parent=11 // pred_fallthru
          _
        // Predicated region
        $region45: #{tpu_custom_call.1} parent=11 // pred_check
          %p409 = pneg %p239
        $region46: #{tpu_custom_call.1} parent=11 // pred_check_branch
          %411 = sbr.rel (%p409) target = $region48
        $region47: #{tpu_custom_call.1} parent=11 // pred_region
          _
        $region48: #{tpu_custom_call.1} parent=11 // pred_fallthru
          _
        // Predicated region
        $region49: #{tpu_custom_call.1} parent=11 // pred_check
          %p412 = pneg %p260
        $region50: #{tpu_custom_call.1} parent=11 // pred_check_branch
          %414 = sbr.rel (%p412) target = $region52
        $region51: #{tpu_custom_call.1} parent=11 // pred_region
          _
        $region52: #{tpu_custom_call.1} parent=11 // pred_fallthru
          _
        // Predicated region
        $region53: #{tpu_custom_call.1} parent=11 // pred_check
          %p415 = pneg %p281
        $region54: #{tpu_custom_call.1} parent=11 // pred_check_branch
          %417 = sbr.rel (%p415) target = $region56
        $region55: #{tpu_custom_call.1} parent=11 // pred_region
          _
        $region56: #{tpu_custom_call.1} parent=11 // pred_fallthru
          _
        // Predicated region
        $region57: #{tpu_custom_call.1} parent=11 // pred_check
          %p418 = pneg %p302
        $region58: #{tpu_custom_call.1} parent=11 // pred_check_branch
          %420 = sbr.rel (%p418) target = $region60
        $region59: #{tpu_custom_call.1} parent=11 // pred_region
          _
        $region60: #{tpu_custom_call.1} parent=11 // pred_fallthru
          _
        // Predicated region
        $region61: #{tpu_custom_call.1} parent=11 // pred_check
          %p421 = pneg %p323
        $region62: #{tpu_custom_call.1} parent=11 // pred_check_branch
          %423 = sbr.rel (%p421) target = $region64
        $region63: #{tpu_custom_call.1} parent=11 // pred_region
          _
        $region64: #{tpu_custom_call.1} parent=11 // pred_fallthru
          _
        // Predicated region
        $region65: #{tpu_custom_call.1} parent=11 // pred_check
          %p424 = pneg %p344
        $region66: #{tpu_custom_call.1} parent=11 // pred_check_branch
          %426 = sbr.rel (%p424) target = $region68
        $region67: #{tpu_custom_call.1} parent=11 // pred_region
          _
        $region68: #{tpu_custom_call.1} parent=11 // pred_fallthru
          _
      $region12: #{tpu_custom_call.1} parent=5 // pred_fallthru
        _
      %p427 = scmp.lt.s32.totalorder %s24, 2
      // Predicated region
      $region69: #{tpu_custom_call.1} parent=5 // pred_check
        %p428 = pneg %p427
      $region70: #{tpu_custom_call.1} parent=5 // pred_check_branch
        %430 = sbr.rel (%p428) target = $region72
      $region71: #{tpu_custom_call.1} parent=5 // pred_region
        // Predicated region
        $region73: #{tpu_custom_call.1} parent=71 // pred_check
          %p431 = pneg %p44
        $region74: #{tpu_custom_call.1} parent=71 // pred_check_branch
          %433 = sbr.rel (%p431) target = $region76
        $region75: #{tpu_custom_call.1} parent=71 // pred_region
          %s434 = smul.u32 4, %s24
          %p435 = scmp.lt.s32.totalorder %s434, 7
          %s436 = scalar_select %p435, %s434, 7
          %s437 = smul.addr %s436, 7
          %s438 = smul.addr %s437, 8
          %s439 = scalar_lea.vmem %s0, %s438
          %s440 = smul.u32 4, %s24
        $region76: #{tpu_custom_call.1} parent=71 // pred_fallthru
          _
      $region72: #{tpu_custom_call.1} parent=5 // pred_fallthru
        _
      %p441 = scmp.le.s32.totalorder 1, %s24
      %p442 = scmp.lt.s32.totalorder %s24, 3
      %p443 = pnand %p441, %p442
      %p444 = pneg %p443
      // Predicated region
      $region77: #{tpu_custom_call.1} parent=5 // pred_check
        _
      $region78: #{tpu_custom_call.1} parent=5 // pred_check_branch
        %446 = sbr.rel (%p443) target = $region80
      $region79: #{tpu_custom_call.1} parent=5 // pred_region
        %s447 = ssub.s32 %s24, 1
        %s448 = smul.u32 4, %s29
        %p449 = scmp.lt.s32.totalorder %s448, 7
        %s450 = scalar_select %p449, %s448, 7
        %s451 = smul.addr %s450, 7
        %s452 = smul.addr %s451, 8
        %s453 = scalar_lea.vmem %s0, %s452
        %p454 = pneg %p50
        %p455 = pneg %p47
        %p456 = pneg %p71
        %p457 = pneg %p68
        %p458 = pneg %p92
        %p459 = pneg %p89
        %p460 = pneg %p113
        %p461 = pneg %p110
        %p462 = pneg %p134
        %p463 = pneg %p131
        %p464 = pneg %p155
        %p465 = pneg %p152
        %p466 = pneg %p176
        %p467 = pneg %p173
        %p468 = pneg %p197
        %p469 = pneg %p194
        %p470 = pneg %p218
        %p471 = pneg %p215
        %p472 = pneg %p239
        %p473 = pneg %p236
        %p474 = pneg %p260
        %p475 = pneg %p257
        %p476 = pneg %p281
        %p477 = pneg %p278
        %p478 = pneg %p302
        %p479 = pneg %p299
        %p480 = pneg %p323
        %p481 = pneg %p320
        %p482 = pneg %p344
        %p483 = pneg %p341
        %p484 = pneg %p370
        %p485 = pneg %p367
        %s486 = sand.u32 %s357, 1
        %s487 = scalar_lea.sflag [#allocation3], %s486
        %s488 = sand.u32 %s357, 1
        %s489 = smul.addr %s488, 112
        %s490 = scalar_lea.vmem [#allocation2], %s489
        %s491 = smul.u32 4, %s29
        %p492 = scmp.lt.s32.totalorder %s491, 7
        %s493 = scalar_select %p492, %s491, 7
        %s494 = smul.addr %s493, 7
        %s495 = smul.addr %s494, 8
        %s496 = scalar_lea.vmem %s0, %s495
        %s497 = smul.u32 4, %s29
        %s498 = smul.u32 4, %s29
        %v500 = vld [vmem:[%s496] sm:$0xff]
        %v501 = vld [vmem:[%s496 + $0x8] sm:$0xff]
        %v502 = vld [vmem:[%s496 + $0x10] sm:$0xff]
        %v503 = vld [vmem:[%s496 + $0x18] sm:$0xff]
        %v504 = vld [vmem:[%s496 + $0x20] sm:$0xff]
        %v505 = vld [vmem:[%s496 + $0x28] sm:$0xff]
        %v506 = vld [vmem:[%s496 + $0x30] sm:$0xff]
        %v507 = vld [vmem:[%s496 + $0x38] sm:$0xff]
        %v508 = vld [vmem:[%s496 + $0x40] sm:$0xff]
        %v509 = vld [vmem:[%s496 + $0x48] sm:$0xff]
        %v510 = vld [vmem:[%s496 + $0x50] sm:$0xff]
        %v511 = vld [vmem:[%s496 + $0x58] sm:$0xff]
        %v512 = vld [vmem:[%s496 + $0x60] sm:$0xff]
        %v513 = vld [vmem:[%s496 + $0x68] sm:$0xff]
        %v514 = vld [vmem:[%s496 + $0x70] sm:$0xff]
        %v515 = vld [vmem:[%s496 + $0x78] sm:$0xff]
        %v516 = vld [vmem:[%s496 + $0x80] sm:$0xff]
        %v517 = vld [vmem:[%s496 + $0x88] sm:$0xff]
        %v518 = vld [vmem:[%s496 + $0x90] sm:$0xff]
        %v519 = vld [vmem:[%s496 + $0x98] sm:$0xff]
        %v520 = vld [vmem:[%s496 + $0xa0] sm:$0xff]
        %v521 = vld [vmem:[%s496 + $0xa8] sm:$0xff]
        %v522 = vld [vmem:[%s496 + $0xb0] sm:$0xff]
        %v523 = vld [vmem:[%s496 + $0xb8] sm:$0xff]
        %v524 = vld [vmem:[%s496 + $0xc0] sm:$0xff]
        %v525 = vld [vmem:[%s496 + $0xc8] sm:$0xff]
        %v526 = vld [vmem:[%s496 + $0xd0] sm:$0xff]
        %v527 = vld [vmem:[%s496 + $0xd8] sm:$0xff]
        %v528 = vpack.c.bf16 %v507, %v500
        %v529 = vpack.c.bf16 %v508, %v501
        %v530 = vpack.c.bf16 %v509, %v502
        %v531 = vpack.c.bf16 %v510, %v503
        %v532 = vpack.c.bf16 %v511, %v504
        %v533 = vpack.c.bf16 %v512, %v505
        %v534 = vpack.c.bf16 %v513, %v506
        %v535 = vpack.c.bf16 %v521, %v514
        %v536 = vpack.c.bf16 %v522, %v515
        %v537 = vpack.c.bf16 %v523, %v516
        %v538 = vpack.c.bf16 %v524, %v517
        %v539 = vpack.c.bf16 %v525, %v518
        %v540 = vpack.c.bf16 %v526, %v519
        %v541 = vpack.c.bf16 %v527, %v520
        %v542 = vld [vmem:[%s1] sm:$0xf]
        %v543 = vld [vmem:[%s1 + $0x4] sm:$0xf]
        %v544 = vld [vmem:[%s1 + $0x8] sm:$0xf]
        %v545 = vld [vmem:[%s1 + $0xc] sm:$0xf]
        %v546 = vld [vmem:[%s1 + $0x10] sm:$0xf]
        %v547 = vld [vmem:[%s1 + $0x14] sm:$0xf]
        %v548 = vld [vmem:[%s1 + $0x18] sm:$0xf]
        %v549 = vld [vmem:[%s1 + $0x1c] sm:$0xf]
        %v550 = vld [vmem:[%s1 + $0x20] sm:$0xf]
        %v551 = vld [vmem:[%s1 + $0x24] sm:$0xf]
        %v552 = vld [vmem:[%s1 + $0x28] sm:$0xf]
        %v553 = vld [vmem:[%s1 + $0x2c] sm:$0xf]
        %v554 = vld [vmem:[%s1 + $0x30] sm:$0xf]
        %v555 = vld [vmem:[%s1 + $0x34] sm:$0xf]
        %v556 = vld [vmem:[%s1 + $0x38] sm:$0xf]
        %v557 = vld [vmem:[%s1 + $0x3c] sm:$0xf]
        %v558 = vld [vmem:[%s1 + $0x40] sm:$0xf]
        %v559 = vld [vmem:[%s1 + $0x44] sm:$0xf]
        %v560 = vld [vmem:[%s1 + $0x48] sm:$0xf]
        %v561 = vld [vmem:[%s1 + $0x4c] sm:$0xf]
        %v562 = vld [vmem:[%s1 + $0x50] sm:$0xf]
        %v563 = vld [vmem:[%s1 + $0x54] sm:$0xf]
        %v564 = vld [vmem:[%s1 + $0x58] sm:$0xf]
        %v565 = vld [vmem:[%s1 + $0x5c] sm:$0xf]
        %v566 = vld [vmem:[%s1 + $0x60] sm:$0xf]
        %v567 = vld [vmem:[%s1 + $0x64] sm:$0xf]
        %v568 = vld [vmem:[%s1 + $0x68] sm:$0xf]
        %v569 = vld [vmem:[%s1 + $0x6c] sm:$0xf]
        %v570 = vld [vmem:[%s1 + $0x70] sm:$0xf]
        %v571 = vld [vmem:[%s1 + $0x74] sm:$0xf]
        %v572 = vld [vmem:[%s1 + $0x78] sm:$0xf]
        %v573 = vld [vmem:[%s1 + $0x7c] sm:$0xf]
        %v574 = vld [vmem:[%s1 + $0x80] sm:$0xf]
        %v575 = vld [vmem:[%s1 + $0x84] sm:$0xf]
        %v576 = vld [vmem:[%s1 + $0x88] sm:$0xf]
        %v577 = vld [vmem:[%s1 + $0x8c] sm:$0xf]
        %v578 = vld [vmem:[%s1 + $0x90] sm:$0xf]
        %v579 = vld [vmem:[%s1 + $0x94] sm:$0xf]
        %v580 = vld [vmem:[%s1 + $0x98] sm:$0xf]
        %v581 = vld [vmem:[%s1 + $0x9c] sm:$0xf]
        %v582 = vld [vmem:[%s1 + $0xa0] sm:$0xf]
        %v583 = vld [vmem:[%s1 + $0xa4] sm:$0xf]
        %v584 = vld [vmem:[%s1 + $0xa8] sm:$0xf]
        %v585 = vld [vmem:[%s1 + $0xac] sm:$0xf]
        %v586 = vld [vmem:[%s1 + $0xb0] sm:$0xf]
        %v587 = vld [vmem:[%s1 + $0xb4] sm:$0xf]
        %v588 = vld [vmem:[%s1 + $0xb8] sm:$0xf]
        %v589 = vld [vmem:[%s1 + $0xbc] sm:$0xf]
        %v590 = vld [vmem:[%s1 + $0xc0] sm:$0xf]
        %v591 = vld [vmem:[%s1 + $0xc4] sm:$0xf]
        %v592 = vld [vmem:[%s1 + $0xc8] sm:$0xf]
        %v593 = vld [vmem:[%s1 + $0xcc] sm:$0xf]
        %v594 = vld [vmem:[%s1 + $0xd0] sm:$0xf]
        %v595 = vld [vmem:[%s1 + $0xd4] sm:$0xf]
        %v596 = vld [vmem:[%s1 + $0xd8] sm:$0xf]
        %v597 = vld [vmem:[%s1 + $0xdc] sm:$0xf]
        %v598 = vld [vmem:[%s1 + $0xe0] sm:$0xf]
        %v599 = vld [vmem:[%s1 + $0xe4] sm:$0xf]
        %v600 = vld [vmem:[%s1 + $0xe8] sm:$0xf]
        %v601 = vld [vmem:[%s1 + $0xec] sm:$0xf]
        %v602 = vld [vmem:[%s1 + $0xf0] sm:$0xf]
        %v603 = vld [vmem:[%s1 + $0xf4] sm:$0xf]
        %v604 = vld [vmem:[%s1 + $0xf8] sm:$0xf]
        %v605 = vld [vmem:[%s1 + $0xfc] sm:$0xf]
        %v606 = vld [vmem:[%s1 + $0x100] sm:$0xf]
        %v607 = vld [vmem:[%s1 + $0x104] sm:$0xf]
        %v608 = vld [vmem:[%s1 + $0x108] sm:$0xf]
        %v609 = vld [vmem:[%s1 + $0x10c] sm:$0xf]
        %v610 = vld [vmem:[%s1 + $0x110] sm:$0xf]
        %v611 = vld [vmem:[%s1 + $0x114] sm:$0xf]
        %v612 = vld [vmem:[%s1 + $0x118] sm:$0xf]
        %v613 = vld [vmem:[%s1 + $0x11c] sm:$0xf]
        %v614 = vld [vmem:[%s1 + $0x120] sm:$0xf]
        %v615 = vld [vmem:[%s1 + $0x124] sm:$0xf]
        %v616 = vld [vmem:[%s1 + $0x128] sm:$0xf]
        %v617 = vld [vmem:[%s1 + $0x12c] sm:$0xf]
        %v618 = vld [vmem:[%s1 + $0x130] sm:$0xf]
        %v619 = vld [vmem:[%s1 + $0x134] sm:$0xf]
        %v620 = vld [vmem:[%s1 + $0x138] sm:$0xf]
        %v621 = vld [vmem:[%s1 + $0x13c] sm:$0xf]
        %v622 = vld [vmem:[%s1 + $0x140] sm:$0xf]
        %v623 = vld [vmem:[%s1 + $0x144] sm:$0xf]
        %v624 = vld [vmem:[%s1 + $0x148] sm:$0xf]
        %v625 = vld [vmem:[%s1 + $0x14c] sm:$0xf]
        %v626 = vld [vmem:[%s1 + $0x150] sm:$0xf]
        %v627 = vld [vmem:[%s1 + $0x154] sm:$0xf]
        %v628 = vld [vmem:[%s1 + $0x158] sm:$0xf]
        %v629 = vld [vmem:[%s1 + $0x15c] sm:$0xf]
        %v630 = vld [vmem:[%s1 + $0x160] sm:$0xf]
        %v631 = vld [vmem:[%s1 + $0x164] sm:$0xf]
        %v632 = vld [vmem:[%s1 + $0x168] sm:$0xf]
        %v633 = vld [vmem:[%s1 + $0x16c] sm:$0xf]
        %v634 = vld [vmem:[%s1 + $0x170] sm:$0xf]
        %v635 = vld [vmem:[%s1 + $0x174] sm:$0xf]
        %v636 = vld [vmem:[%s1 + $0x178] sm:$0xf]
        %v637 = vld [vmem:[%s1 + $0x17c] sm:$0xf]
        %v638 = vld [vmem:[%s1 + $0x180] sm:$0xf]
        %v639 = vld [vmem:[%s1 + $0x184] sm:$0xf]
        %v640 = vld [vmem:[%s2] sm:$0x1]
        %v642 = vlaneseq
        %v643 = vshrl.u32 %v642, 7
        %v644 = vsub.s32 0, %v643
        %v645 = vrot.slane %v640, %v644
        %v745 = vunpack.c.l.b16 %v542
        %v746 = vunpack.c.l.b16 %v543
        %v747 = vunpack.c.l.b16 %v544
        %v748 = vunpack.c.l.b16 %v545
        %v749 = vunpack.c.l.b16 %v546
        %v750 = vunpack.c.l.b16 %v547
        %v751 = vunpack.c.l.b16 %v548
        %v752 = vunpack.c.l.b16 %v549
        %v753 = vunpack.c.l.b16 %v550
        %v754 = vunpack.c.l.b16 %v551
        %v755 = vunpack.c.l.b16 %v552
        %v756 = vunpack.c.l.b16 %v553
        %v757 = vunpack.c.l.b16 %v554
        %v758 = vunpack.c.l.b16 %v555
        %v759 = vunpack.c.l.b16 %v556
        %v760 = vunpack.c.l.b16 %v557
        %v761 = vunpack.c.l.b16 %v558
        %v762 = vunpack.c.l.b16 %v559
        %v763 = vunpack.c.l.b16 %v560
        %v764 = vunpack.c.l.b16 %v561
        %v765 = vunpack.c.l.b16 %v562
        %v766 = vunpack.c.l.b16 %v563
        %v767 = vunpack.c.l.b16 %v564
        %v768 = vunpack.c.l.b16 %v565
        %v769 = vunpack.c.l.b16 %v566
        %v770 = vunpack.c.l.b16 %v567
        %v771 = vunpack.c.l.b16 %v568
        %v772 = vunpack.c.l.b16 %v569
        %v773 = vunpack.c.l.b16 %v570
        %v774 = vunpack.c.l.b16 %v571
        %v775 = vunpack.c.l.b16 %v572
        %v776 = vunpack.c.l.b16 %v573
        %v777 = vunpack.c.l.b16 %v574
        %v778 = vunpack.c.l.b16 %v575
        %v779 = vunpack.c.l.b16 %v576
        %v780 = vunpack.c.l.b16 %v577
        %v781 = vunpack.c.l.b16 %v578
        %v782 = vunpack.c.l.b16 %v579
        %v783 = vunpack.c.l.b16 %v580
        %v784 = vunpack.c.l.b16 %v581
        %v785 = vunpack.c.l.b16 %v582
        %v786 = vunpack.c.l.b16 %v583
        %v787 = vunpack.c.l.b16 %v584
        %v788 = vunpack.c.l.b16 %v585
        %v789 = vunpack.c.l.b16 %v586
        %v790 = vunpack.c.l.b16 %v587
        %v791 = vunpack.c.l.b16 %v588
        %v792 = vunpack.c.l.b16 %v589
        %v793 = vunpack.c.l.b16 %v590
        %v794 = vunpack.c.l.b16 %v591
        %v795 = vunpack.c.l.b16 %v592
        %v796 = vunpack.c.l.b16 %v593
        %v797 = vunpack.c.l.b16 %v594
        %v798 = vunpack.c.l.b16 %v595
        %v799 = vunpack.c.l.b16 %v596
        %v800 = vunpack.c.l.b16 %v597
        %v801 = vunpack.c.l.b16 %v598
        %v802 = vunpack.c.l.b16 %v599
        %v803 = vunpack.c.l.b16 %v600
        %v804 = vunpack.c.l.b16 %v601
        %v805 = vunpack.c.l.b16 %v602
        %v806 = vunpack.c.l.b16 %v603
        %v807 = vunpack.c.l.b16 %v604
        %v808 = vunpack.c.l.b16 %v605
        %v809 = vunpack.c.l.b16 %v606
        %v810 = vunpack.c.l.b16 %v607
        %v811 = vunpack.c.l.b16 %v608
        %v812 = vunpack.c.l.b16 %v609
        %v813 = vunpack.c.l.b16 %v610
        %v814 = vunpack.c.l.b16 %v611
        %v815 = vunpack.c.l.b16 %v612
        %v816 = vunpack.c.l.b16 %v613
        %v817 = vunpack.c.l.b16 %v614
        %v818 = vunpack.c.l.b16 %v615
        %v819 = vunpack.c.l.b16 %v616
        %v820 = vunpack.c.l.b16 %v617
        %v821 = vunpack.c.l.b16 %v618
        %v822 = vunpack.c.l.b16 %v619
        %v823 = vunpack.c.l.b16 %v620
        %v824 = vunpack.c.l.b16 %v621
        %v825 = vunpack.c.l.b16 %v622
        %v826 = vunpack.c.l.b16 %v623
        %v827 = vunpack.c.l.b16 %v624
        %v828 = vunpack.c.l.b16 %v625
        %v829 = vunpack.c.l.b16 %v626
        %v830 = vunpack.c.l.b16 %v627
        %v831 = vunpack.c.l.b16 %v628
        %v832 = vunpack.c.l.b16 %v629
        %v833 = vunpack.c.l.b16 %v630
        %v834 = vunpack.c.l.b16 %v631
        %v835 = vunpack.c.l.b16 %v632
        %v836 = vunpack.c.l.b16 %v633
        %v837 = vunpack.c.l.b16 %v634
        %v838 = vunpack.c.l.b16 %v635
        %v839 = vunpack.c.l.b16 %v636
        %v840 = vunpack.c.l.b16 %v637
        %v841 = vunpack.c.l.b16 %v638
        %v842 = vunpack.c.l.b16 %v639
        %v843 = vpack.c.b16 %v746, %v745
        %v844 = vpack.c.b16 %v748, %v747
        %v845 = vpack.c.b16 %v750, %v749
        %v846 = vpack.c.b16 %v752, %v751
        %v847 = vpack.c.b16 %v754, %v753
        %v848 = vpack.c.b16 %v756, %v755
        %v849 = vpack.c.b16 %v758, %v757
        %v850 = vpack.c.b16 %v760, %v759
        %v851 = vpack.c.b16 %v762, %v761
        %v852 = vpack.c.b16 %v764, %v763
        %v853 = vpack.c.b16 %v766, %v765
        %v854 = vpack.c.b16 %v768, %v767
        %v855 = vpack.c.b16 %v770, %v769
        %v856 = vpack.c.b16 %v772, %v771
        %v857 = vpack.c.b16 %v774, %v773
        %v858 = vpack.c.b16 %v776, %v775
        %v859 = vpack.c.b16 %v778, %v777
        %v860 = vpack.c.b16 %v780, %v779
        %v861 = vpack.c.b16 %v782, %v781
        %v862 = vpack.c.b16 %v784, %v783
        %v863 = vpack.c.b16 %v786, %v785
        %v864 = vpack.c.b16 %v788, %v787
        %v865 = vpack.c.b16 %v790, %v789
        %v866 = vpack.c.b16 %v792, %v791
        %v867 = vpack.c.b16 %v794, %v793
        %v868 = vpack.c.b16 %v796, %v795
        %v869 = vpack.c.b16 %v798, %v797
        %v870 = vpack.c.b16 %v800, %v799
        %v871 = vpack.c.b16 %v802, %v801
        %v872 = vpack.c.b16 %v804, %v803
        %v873 = vpack.c.b16 %v806, %v805
        %v874 = vpack.c.b16 %v808, %v807
        %v875 = vpack.c.b16 %v810, %v809
        %v876 = vpack.c.b16 %v812, %v811
        %v877 = vpack.c.b16 %v814, %v813
        %v878 = vpack.c.b16 %v816, %v815
        %v879 = vpack.c.b16 %v818, %v817
        %v880 = vpack.c.b16 %v820, %v819
        %v881 = vpack.c.b16 %v822, %v821
        %v882 = vpack.c.b16 %v824, %v823
        %v883 = vpack.c.b16 %v826, %v825
        %v884 = vpack.c.b16 %v828, %v827
        %v885 = vpack.c.b16 %v830, %v829
        %v886 = vpack.c.b16 %v832, %v831
        %v887 = vpack.c.b16 %v834, %v833
        %v888 = vpack.c.b16 %v836, %v835
        %v889 = vpack.c.b16 %v838, %v837
        %v890 = vpack.c.b16 %v840, %v839
        %v891 = vpack.c.b16 %v842, %v841
        %vm941 = vcmask 130048
        %v943 = vsel %vm941, %v534, 0
        %v946 = vsel %vm941, %v541, 0
        %948 = vmatprep.subr.bf16.mxu0 0
        %949 = vmatpush1.bf16.msra.mxu0 %v850
        %950 = vmatprep.subr.bf16.mxu0 0
        %951 = vmatpush1.bf16.msra.mxu0 %v849
        %952 = vmatprep.subr.bf16.mxu0 0
        %953 = vmatpush1.bf16.msra.mxu0 %v848
        %954 = vmatprep.subr.bf16.mxu0 0
        %955 = vmatpush1.bf16.msra.mxu0 %v847
        %956 = vmatprep.subr.bf16.mxu0 0
        %957 = vmatpush1.bf16.msra.mxu0 %v846
        %958 = vmatprep.subr.bf16.mxu0 0
        %959 = vmatpush1.bf16.msra.mxu0 %v845
        %960 = vmatprep.subr.bf16.mxu0 0
        %961 = vmatpush1.bf16.msra.mxu0 %v844
        %962 = vmatprep.subr.bf16.mxu0 0
        %963 = vmatpush1.bf16.msra.mxu0 %v843
        %964 = vmatprep.subr.bf16.mxu0 0
        %965 = vmatpush2.bf16.msra.mxu0 %v858
        %966 = vmatprep.subr.bf16.mxu0 0
        %967 = vmatpush2.bf16.msra.mxu0 %v857
        %968 = vmatprep.subr.bf16.mxu0 0
        %969 = vmatpush2.bf16.msra.mxu0 %v856
        %970 = vmatprep.subr.bf16.mxu0 0
        %971 = vmatpush2.bf16.msra.mxu0 %v855
        %972 = vmatprep.subr.bf16.mxu0 0
        %973 = vmatpush2.bf16.msra.mxu0 %v854
        %974 = vmatprep.subr.bf16.mxu0 0
        %975 = vmatpush2.bf16.msra.mxu0 %v853
        %976 = vmatprep.subr.bf16.mxu0 0
        %977 = vmatpush2.bf16.msra.mxu0 %v852
        %978 = vmatprep.subr.bf16.mxu0 0
        %979 = vmatpush2.bf16.msra.mxu0 %v851
        %980 = vmatprep.mubr.bf16.mxu0 %v529
        %981 = vmatmul.mubr.bf16.gmra.mxu0 %v528
        %v982 = vpop.f32.mrf.mxu0
        %v983 = vadd.f32 %v645, %v982
        %v984 = vpop.f32.mrf.mxu0
        %v985 = vpop.f32.mrf.mxu0
        %v986 = vadd.f32 %v645, %v985
        %v987 = vpop.f32.mrf.mxu0
        %988 = vmatprep.mubr.bf16.mxu0 %v536
        %989 = vmatmul.mubr.bf16.gmra.mxu0 %v535
        %v990 = vpop.f32.mrf.mxu0
        %v991 = vadd.f32 %v645, %v990
        %v992 = vpop.f32.mrf.mxu0
        %v993 = vpop.f32.mrf.mxu0
        %v994 = vadd.f32 %v645, %v993
        %v995 = vpop.f32.mrf.mxu0
        %996 = vdwg.mxu0
        %997 = vmatprep.subr.bf16.mxu0 0
        %998 = vmatpush1.bf16.msra.mxu0 %v866
        %999 = vmatprep.subr.bf16.mxu0 0
        %1000 = vmatpush1.bf16.msra.mxu0 %v865
        %1001 = vmatprep.subr.bf16.mxu0 0
        %1002 = vmatpush1.bf16.msra.mxu0 %v864
        %1003 = vmatprep.subr.bf16.mxu0 0
        %1004 = vmatpush1.bf16.msra.mxu0 %v863
        %1005 = vmatprep.subr.bf16.mxu0 0
        %1006 = vmatpush1.bf16.msra.mxu0 %v862
        %1007 = vmatprep.subr.bf16.mxu0 0
        %1008 = vmatpush1.bf16.msra.mxu0 %v861
        %1009 = vmatprep.subr.bf16.mxu0 0
        %1010 = vmatpush1.bf16.msra.mxu0 %v860
        %1011 = vmatprep.subr.bf16.mxu0 0
        %1012 = vmatpush1.bf16.msra.mxu0 %v859
        %1013 = vmatprep.subr.bf16.mxu0 0
        %1014 = vmatpush2.bf16.msra.mxu0 %v874
        %1015 = vmatprep.subr.bf16.mxu0 0
        %1016 = vmatpush2.bf16.msra.mxu0 %v873
        %1017 = vmatprep.subr.bf16.mxu0 0
        %1018 = vmatpush2.bf16.msra.mxu0 %v872
        %1019 = vmatprep.subr.bf16.mxu0 0
        %1020 = vmatpush2.bf16.msra.mxu0 %v871
        %1021 = vmatprep.subr.bf16.mxu0 0
        %1022 = vmatpush2.bf16.msra.mxu0 %v870
        %1023 = vmatprep.subr.bf16.mxu0 0
        %1024 = vmatpush2.bf16.msra.mxu0 %v869
        %1025 = vmatprep.subr.bf16.mxu0 0
        %1026 = vmatpush2.bf16.msra.mxu0 %v868
        %1027 = vmatprep.subr.bf16.mxu0 0
        %1028 = vmatpush2.bf16.msra.mxu0 %v867
        %1029 = vmatprep.mubr.bf16.mxu0 %v531
        %1030 = vmatmul.mubr.bf16.gmra.mxu0 %v530
        %v1031 = vpop.f32.mrf.mxu0
        %v1032 = vadd.f32 %v983, %v1031
        %v1033 = vpop.f32.mrf.mxu0
        %v1034 = vpop.f32.mrf.mxu0
        %v1035 = vadd.f32 %v986, %v1034
        %v1036 = vpop.f32.mrf.mxu0
        %1037 = vmatprep.mubr.bf16.mxu0 %v538
        %1038 = vmatmul.mubr.bf16.gmra.mxu0 %v537
        %v1039 = vpop.f32.mrf.mxu0
        %v1040 = vadd.f32 %v991, %v1039
        %v1041 = vpop.f32.mrf.mxu0
        %v1042 = vpop.f32.mrf.mxu0
        %v1043 = vadd.f32 %v994, %v1042
        %v1044 = vpop.f32.mrf.mxu0
        %1045 = vdwg.mxu0
        %1046 = vmatprep.subr.bf16.mxu0 0
        %1047 = vmatpush1.bf16.msra.mxu0 %v882
        %1048 = vmatprep.subr.bf16.mxu0 0
        %1049 = vmatpush1.bf16.msra.mxu0 %v881
        %1050 = vmatprep.subr.bf16.mxu0 0
        %1051 = vmatpush1.bf16.msra.mxu0 %v880
        %1052 = vmatprep.subr.bf16.mxu0 0
        %1053 = vmatpush1.bf16.msra.mxu0 %v879
        %1054 = vmatprep.subr.bf16.mxu0 0
        %1055 = vmatpush1.bf16.msra.mxu0 %v878
        %1056 = vmatprep.subr.bf16.mxu0 0
        %1057 = vmatpush1.bf16.msra.mxu0 %v877
        %1058 = vmatprep.subr.bf16.mxu0 0
        %1059 = vmatpush1.bf16.msra.mxu0 %v876
        %1060 = vmatprep.subr.bf16.mxu0 0
        %1061 = vmatpush1.bf16.msra.mxu0 %v875
        %1062 = vmatprep.subr.bf16.mxu0 0
        %1063 = vmatpush2.bf16.msra.mxu0 %v890
        %1064 = vmatprep.subr.bf16.mxu0 0
        %1065 = vmatpush2.bf16.msra.mxu0 %v889
        %1066 = vmatprep.subr.bf16.mxu0 0
        %1067 = vmatpush2.bf16.msra.mxu0 %v888
        %1068 = vmatprep.subr.bf16.mxu0 0
        %1069 = vmatpush2.bf16.msra.mxu0 %v887
        %1070 = vmatprep.subr.bf16.mxu0 0
        %1071 = vmatpush2.bf16.msra.mxu0 %v886
        %1072 = vmatprep.subr.bf16.mxu0 0
        %1073 = vmatpush2.bf16.msra.mxu0 %v885
        %1074 = vmatprep.subr.bf16.mxu0 0
        %1075 = vmatpush2.bf16.msra.mxu0 %v884
        %1076 = vmatprep.subr.bf16.mxu0 0
        %1077 = vmatpush2.bf16.msra.mxu0 %v883
        %1078 = vmatprep.mubr.bf16.mxu0 %v533
        %1079 = vmatmul.mubr.bf16.gmra.mxu0 %v532
        %v1080 = vpop.f32.mrf.mxu0
        %v1081 = vadd.f32 %v1032, %v1080
        %v1082 = vpop.f32.mrf.mxu0
        %v1083 = vpop.f32.mrf.mxu0
        %v1084 = vadd.f32 %v1035, %v1083
        %v1085 = vpop.f32.mrf.mxu0
        %1086 = vmatprep.mubr.bf16.mxu0 %v540
        %1087 = vmatmul.mubr.bf16.gmra.mxu0 %v539
        %v1088 = vpop.f32.mrf.mxu0
        %v1089 = vadd.f32 %v1040, %v1088
        %v1090 = vpop.f32.mrf.mxu0
        %v1091 = vpop.f32.mrf.mxu0
        %v1092 = vadd.f32 %v1043, %v1091
        %v1093 = vpop.f32.mrf.mxu0
        %1094 = vdwg.mxu0
        %1095 = vmatprep.subr.bf16.mxu0 0
        %1096 = vmatpush1.bf16.msra.mxu0 0
        %1097 = vmatprep.subr.bf16.mxu0 0
        %1098 = vmatpush1.bf16.msra.mxu0 0
        %1099 = vmatprep.subr.bf16.mxu0 0
        %1100 = vmatpush1.bf16.msra.mxu0 0
        %1101 = vmatprep.subr.bf16.mxu0 0
        %1102 = vmatpush1.bf16.msra.mxu0 0
        %1103 = vmatprep.subr.bf16.mxu0 0
        %1104 = vmatpush1.bf16.msra.mxu0 0
        %1105 = vmatprep.subr.bf16.mxu0 0
        %1106 = vmatpush1.bf16.msra.mxu0 0
        %1107 = vmatprep.subr.bf16.mxu0 0
        %1108 = vmatpush1.bf16.msra.mxu0 0
        %1109 = vmatprep.subr.bf16.mxu0 0
        %1110 = vmatpush1.bf16.msra.mxu0 %v891
        %1111 = vmatprep.subr.bf16.mxu0 0
        %1112 = vmatpush2.bf16.msra.mxu0 0
        %1113 = vmatprep.subr.bf16.mxu0 0
        %1114 = vmatpush2.bf16.msra.mxu0 0
        %1115 = vmatprep.subr.bf16.mxu0 0
        %1116 = vmatpush2.bf16.msra.mxu0 0
        %1117 = vmatprep.subr.bf16.mxu0 0
        %1118 = vmatpush2.bf16.msra.mxu0 0
        %1119 = vmatprep.subr.bf16.mxu0 0
        %1120 = vmatpush2.bf16.msra.mxu0 0
        %1121 = vmatprep.subr.bf16.mxu0 0
        %1122 = vmatpush2.bf16.msra.mxu0 0
        %1123 = vmatprep.subr.bf16.mxu0 0
        %1124 = vmatpush2.bf16.msra.mxu0 0
        %1125 = vmatprep.subr.bf16.mxu0 0
        %1126 = vmatpush2.bf16.msra.mxu0 0
        %1127 = vmatprep.mubr.bf16.mxu0 0
        %1128 = vmatmul.mubr.bf16.gmra.mxu0 %v943
        %v1129 = vpop.f32.mrf.mxu0
        %v1130 = vadd.f32 %v1081, %v1129
        %v1131 = vpop.f32.mrf.mxu0
        %v1132 = vpop.f32.mrf.mxu0
        %v1133 = vadd.f32 %v1084, %v1132
        %v1134 = vpop.f32.mrf.mxu0
        %1135 = vmatprep.mubr.bf16.mxu0 0
        %1136 = vmatmul.mubr.bf16.gmra.mxu0 %v946
        %v1137 = vpop.f32.mrf.mxu0
        %v1138 = vadd.f32 %v1089, %v1137
        %v1139 = vpop.f32.mrf.mxu0
        %v1140 = vpop.f32.mrf.mxu0
        %v1141 = vadd.f32 %v1092, %v1140
        %v1142 = vpop.f32.mrf.mxu0
        %1143 = vdwg.mxu0
        %v1144 = vmax.f32 %v1130, 0.0
        %v1145 = vmax.f32 %v1133, 0.0
        %v1146 = vmax.f32 %v1138, 0.0
        %v1147 = vmax.f32 %v1141, 0.0
        %v1148 = vpack.c.bf16 %v1145, %v1144
        %v1149 = vpack.c.bf16 %v1147, %v1146
        %v1150 = vld [vmem:[%s3] sm:$0xf]
        %v1151 = vld [vmem:[%s3 + $0x4] sm:$0xf]
        %v1152 = vld [vmem:[%s3 + $0x8] sm:$0xf]
        %v1153 = vld [vmem:[%s3 + $0xc] sm:$0xf]
        %v1154 = vld [vmem:[%s3 + $0x10] sm:$0xf]
        %v1155 = vld [vmem:[%s3 + $0x14] sm:$0xf]
        %v1156 = vld [vmem:[%s3 + $0x18] sm:$0xf]
        %v1157 = vld [vmem:[%s3 + $0x1c] sm:$0xf]
        %v1158 = vld [vmem:[%s3 + $0x20] sm:$0xf]
        %v1159 = vld [vmem:[%s3 + $0x24] sm:$0xf]
        %v1160 = vld [vmem:[%s3 + $0x28] sm:$0xf]
        %v1161 = vld [vmem:[%s3 + $0x2c] sm:$0xf]
        %v1162 = vld [vmem:[%s3 + $0x30] sm:$0xf]
        %v1163 = vld [vmem:[%s3 + $0x34] sm:$0xf]
        %v1164 = vld [vmem:[%s3 + $0x38] sm:$0xf]
        %v1165 = vld [vmem:[%s3 + $0x3c] sm:$0xf]
        %v1166 = vld [vmem:[%s4] sm:$0x1]
        %v1168 = vlaneseq
        %v1169 = vshrl.u32 %v1168, 7
        %v1170 = vsub.s32 0, %v1169
        %v1171 = vrot.slane %v1166, %v1170
        %v1189 = vunpack.c.l.b16 %v1150
        %v1190 = vunpack.c.l.b16 %v1151
        %v1191 = vunpack.c.l.b16 %v1152
        %v1192 = vunpack.c.l.b16 %v1153
        %v1193 = vunpack.c.l.b16 %v1154
        %v1194 = vunpack.c.l.b16 %v1155
        %v1195 = vunpack.c.l.b16 %v1156
        %v1196 = vunpack.c.l.b16 %v1157
        %v1197 = vunpack.c.l.b16 %v1158
        %v1198 = vunpack.c.l.b16 %v1159
        %v1199 = vunpack.c.l.b16 %v1160
        %v1200 = vunpack.c.l.b16 %v1161
        %v1201 = vunpack.c.l.b16 %v1162
        %v1202 = vunpack.c.l.b16 %v1163
        %v1203 = vunpack.c.l.b16 %v1164
        %v1204 = vunpack.c.l.b16 %v1165
        %v1205 = vpack.c.b16 %v1190, %v1189
        %v1206 = vpack.c.b16 %v1192, %v1191
        %v1207 = vpack.c.b16 %v1194, %v1193
        %v1208 = vpack.c.b16 %v1196, %v1195
        %v1209 = vpack.c.b16 %v1198, %v1197
        %v1210 = vpack.c.b16 %v1200, %v1199
        %v1211 = vpack.c.b16 %v1202, %v1201
        %v1212 = vpack.c.b16 %v1204, %v1203
        %1221 = vmatprep.subr.bf16.mxu0 0
        %1222 = vmatpush1.bf16.msra.mxu0 %v1212
        %1223 = vmatprep.subr.bf16.mxu0 0
        %1224 = vmatpush1.bf16.msra.mxu0 %v1211
        %1225 = vmatprep.subr.bf16.mxu0 0
        %1226 = vmatpush1.bf16.msra.mxu0 %v1210
        %1227 = vmatprep.subr.bf16.mxu0 0
        %1228 = vmatpush1.bf16.msra.mxu0 %v1209
        %1229 = vmatprep.subr.bf16.mxu0 0
        %1230 = vmatpush1.bf16.msra.mxu0 %v1208
        %1231 = vmatprep.subr.bf16.mxu0 0
        %1232 = vmatpush1.bf16.msra.mxu0 %v1207
        %1233 = vmatprep.subr.bf16.mxu0 0
        %1234 = vmatpush1.bf16.msra.mxu0 %v1206
        %1235 = vmatprep.subr.bf16.mxu0 0
        %1236 = vmatpush1.bf16.msra.mxu0 %v1205
        %1237 = vmatprep.subr.bf16.mxu0 0
        %1238 = vmatpush2.bf16.msra.mxu0 0
        %1239 = vmatprep.subr.bf16.mxu0 0
        %1240 = vmatpush2.bf16.msra.mxu0 0
        %1241 = vmatprep.subr.bf16.mxu0 0
        %1242 = vmatpush2.bf16.msra.mxu0 0
        %1243 = vmatprep.subr.bf16.mxu0 0
        %1244 = vmatpush2.bf16.msra.mxu0 0
        %1245 = vmatprep.subr.bf16.mxu0 0
        %1246 = vmatpush2.bf16.msra.mxu0 0
        %1247 = vmatprep.subr.bf16.mxu0 0
        %1248 = vmatpush2.bf16.msra.mxu0 0
        %1249 = vmatprep.subr.bf16.mxu0 0
        %1250 = vmatpush2.bf16.msra.mxu0 0
        %1251 = vmatprep.subr.bf16.mxu0 0
        %1252 = vmatpush2.bf16.msra.mxu0 0
        %1253 = vmatprep.mubr.bf16.mxu0 0
        %1254 = vmatmul.mubr.bf16.gmra.mxu0 %v1148
        %v1255 = vpop.f32.mrf.mxu0
        %v1256 = vadd.f32 %v1171, %v1255
        %v1257 = vpop.f32.mrf.mxu0
        %v1258 = vpop.f32.mrf.mxu0
        %v1259 = vadd.f32 %v1171, %v1258
        %v1260 = vpop.f32.mrf.mxu0
        %1261 = vmatprep.mubr.bf16.mxu0 0
        %1262 = vmatmul.mubr.bf16.gmra.mxu0 %v1149
        %v1263 = vpop.f32.mrf.mxu0
        %v1264 = vadd.f32 %v1171, %v1263
        %v1265 = vpop.f32.mrf.mxu0
        %v1266 = vpop.f32.mrf.mxu0
        %v1267 = vadd.f32 %v1171, %v1266
        %v1268 = vpop.f32.mrf.mxu0
        %1269 = vdwg.mxu0
        %v1270 = vmax.f32 %v1256, 0.0
        %v1271 = vmax.f32 %v1259, 0.0
        %v1272 = vmax.f32 %v1264, 0.0
        %v1273 = vmax.f32 %v1267, 0.0
        %v1274 = vpack.c.bf16 %v1271, %v1270
        %v1275 = vpack.c.bf16 %v1273, %v1272
        %v1276 = vld [vmem:[%s5] sm:$0xf]
        %v1277 = vld [vmem:[%s5 + $0x4] sm:$0xf]
        %v1278 = vld [vmem:[%s5 + $0x8] sm:$0xf]
        %v1279 = vld [vmem:[%s5 + $0xc] sm:$0xf]
        %v1280 = vld [vmem:[%s5 + $0x10] sm:$0xf]
        %v1281 = vld [vmem:[%s5 + $0x14] sm:$0xf]
        %v1282 = vld [vmem:[%s5 + $0x18] sm:$0xf]
        %v1283 = vld [vmem:[%s5 + $0x1c] sm:$0xf]
        %v1284 = vld [vmem:[%s6] sm:$0x1]
        %v1286 = vlaneseq
        %v1287 = vshrl.u32 %v1286, 7
        %v1288 = vsub.s32 0, %v1287
        %v1289 = vrot.slane %v1284, %v1288
        %v1299 = vunpack.c.l.b16 %v1276
        %v1300 = vunpack.c.l.b16 %v1277
        %v1301 = vunpack.c.l.b16 %v1278
        %v1302 = vunpack.c.l.b16 %v1279
        %v1303 = vunpack.c.l.b16 %v1280
        %v1304 = vunpack.c.l.b16 %v1281
        %v1305 = vunpack.c.l.b16 %v1282
        %v1306 = vunpack.c.l.b16 %v1283
        %v1307 = vpack.c.b16 %v1300, %v1299
        %v1308 = vpack.c.b16 %v1302, %v1301
        %v1309 = vpack.c.b16 %v1304, %v1303
        %v1310 = vpack.c.b16 %v1306, %v1305
        %vm1315 = vcmask 523264
        %v1317 = vsel %vm1315, %v1274, 0
        %v1320 = vsel %vm1315, %v1275, 0
        %1322 = vmatprep.subr.bf16.mxu0 0
        %1323 = vmatpush1.bf16.msra.mxu0 0
        %1324 = vmatprep.subr.bf16.mxu0 0
        %1325 = vmatpush1.bf16.msra.mxu0 0
        %1326 = vmatprep.subr.bf16.mxu0 0
        %1327 = vmatpush1.bf16.msra.mxu0 0
        %1328 = vmatprep.subr.bf16.mxu0 0
        %1329 = vmatpush1.bf16.msra.mxu0 0
        %1330 = vmatprep.subr.bf16.mxu0 0
        %1331 = vmatpush1.bf16.msra.mxu0 %v1310
        %1332 = vmatprep.subr.bf16.mxu0 0
        %1333 = vmatpush1.bf16.msra.mxu0 %v1309
        %1334 = vmatprep.subr.bf16.mxu0 0
        %1335 = vmatpush1.bf16.msra.mxu0 %v1308
        %1336 = vmatprep.subr.bf16.mxu0 0
        %1337 = vmatpush1.bf16.msra.mxu0 %v1307
        %1338 = vmatprep.subr.bf16.mxu0 0
        %1339 = vmatpush2.bf16.msra.mxu0 0
        %1340 = vmatprep.subr.bf16.mxu0 0
        %1341 = vmatpush2.bf16.msra.mxu0 0
        %1342 = vmatprep.subr.bf16.mxu0 0
        %1343 = vmatpush2.bf16.msra.mxu0 0
        %1344 = vmatprep.subr.bf16.mxu0 0
        %1345 = vmatpush2.bf16.msra.mxu0 0
        %1346 = vmatprep.subr.bf16.mxu0 0
        %1347 = vmatpush2.bf16.msra.mxu0 0
        %1348 = vmatprep.subr.bf16.mxu0 0
        %1349 = vmatpush2.bf16.msra.mxu0 0
        %1350 = vmatprep.subr.bf16.mxu0 0
        %1351 = vmatpush2.bf16.msra.mxu0 0
        %1352 = vmatprep.subr.bf16.mxu0 0
        %1353 = vmatpush2.bf16.msra.mxu0 0
        %1354 = vmatprep.mubr.bf16.mxu0 0
        %1355 = vmatmul.mubr.bf16.gmra.mxu0 %v1317
        %v1356 = vpop.f32.mrf.mxu0
        %v1357 = vadd.f32 %v1289, %v1356
        %v1358 = vpop.f32.mrf.mxu0
        %v1359 = vpop.f32.mrf.mxu0
        %v1360 = vadd.f32 %v1289, %v1359
        %v1361 = vpop.f32.mrf.mxu0
        %1362 = vmatprep.mubr.bf16.mxu0 0
        %1363 = vmatmul.mubr.bf16.gmra.mxu0 %v1320
        %v1364 = vpop.f32.mrf.mxu0
        %v1365 = vadd.f32 %v1289, %v1364
        %v1366 = vpop.f32.mrf.mxu0
        %v1367 = vpop.f32.mrf.mxu0
        %v1368 = vadd.f32 %v1289, %v1367
        %v1369 = vpop.f32.mrf.mxu0
        %1370 = vdwg.mxu0
        %v1371 = vmax.f32 %v1357, 0.0
        %v1372 = vmax.f32 %v1360, 0.0
        %v1373 = vmax.f32 %v1365, 0.0
        %v1374 = vmax.f32 %v1368, 0.0
        %v1375 = vpack.c.bf16 %v1372, %v1371
        %v1376 = vpack.c.bf16 %v1374, %v1373
        %v1377 = vld [vmem:[%s7] sm:$0xf]
        %v1378 = vld [vmem:[%s7 + $0x4] sm:$0x3]
        %v1379 = vld [vmem:[%s8] sm:$0x1]
        %v1381 = vlaneseq
        %v1382 = vshrl.u32 %v1381, 7
        %v1383 = vsub.s32 0, %v1382
        %v1384 = vrot.slane %v1379, %v1383
        %v1388 = vunpack.c.l.b16 %v1377
        %v1389 = vunpack.c.l.b16 %v1378
        %v1390 = vpack.c.b16 %v1389, %v1388
        %vm1391 = vcmask 97280
        %v1393 = vsel %vm1391, %v1375, 0
        %v1396 = vsel %vm1391, %v1376, 0
        %vm1398 = vcmask 1045504
        %v1400 = vsel %vm1398, %v1390, 0
        %1402 = vmatprep.subr.bf16.mxu0 0
        %1403 = vmatpush1.bf16.msra.mxu0 0
        %1404 = vmatprep.subr.bf16.mxu0 0
        %1405 = vmatpush1.bf16.msra.mxu0 0
        %1406 = vmatprep.subr.bf16.mxu0 0
        %1407 = vmatpush1.bf16.msra.mxu0 0
        %1408 = vmatprep.subr.bf16.mxu0 0
        %1409 = vmatpush1.bf16.msra.mxu0 0
        %1410 = vmatprep.subr.bf16.mxu0 0
        %1411 = vmatpush1.bf16.msra.mxu0 0
        %1412 = vmatprep.subr.bf16.mxu0 0
        %1413 = vmatpush1.bf16.msra.mxu0 0
        %1414 = vmatprep.subr.bf16.mxu0 0
        %1415 = vmatpush1.bf16.msra.mxu0 0
        %1416 = vmatprep.subr.bf16.mxu0 0
        %1417 = vmatpush1.bf16.msra.mxu0 %v1400
        %1418 = vmatprep.subr.bf16.mxu0 0
        %1419 = vmatpush2.bf16.msra.mxu0 0
        %1420 = vmatprep.subr.bf16.mxu0 0
        %1421 = vmatpush2.bf16.msra.mxu0 0
        %1422 = vmatprep.subr.bf16.mxu0 0
        %1423 = vmatpush2.bf16.msra.mxu0 0
        %1424 = vmatprep.subr.bf16.mxu0 0
        %1425 = vmatpush2.bf16.msra.mxu0 0
        %1426 = vmatprep.subr.bf16.mxu0 0
        %1427 = vmatpush2.bf16.msra.mxu0 0
        %1428 = vmatprep.subr.bf16.mxu0 0
        %1429 = vmatpush2.bf16.msra.mxu0 0
        %1430 = vmatprep.subr.bf16.mxu0 0
        %1431 = vmatpush2.bf16.msra.mxu0 0
        %1432 = vmatprep.subr.bf16.mxu0 0
        %1433 = vmatpush2.bf16.msra.mxu0 0
        %1434 = vmatprep.mubr.bf16.mxu0 0
        %1435 = vmatmul.mubr.bf16.gmra.mxu0 %v1393
        %v1436 = vpop.f32.mrf.mxu0
        %v1437 = vadd.f32 %v1384, %v1436
        %v1438 = vpop.f32.mrf.mxu0
        %v1439 = vpop.f32.mrf.mxu0
        %v1440 = vadd.f32 %v1384, %v1439
        %v1441 = vpop.f32.mrf.mxu0
        %1442 = vmatprep.mubr.bf16.mxu0 0
        %1443 = vmatmul.mubr.bf16.gmra.mxu0 %v1396
        %v1444 = vpop.f32.mrf.mxu0
        %v1445 = vadd.f32 %v1384, %v1444
        %v1446 = vpop.f32.mrf.mxu0
        %v1447 = vpop.f32.mrf.mxu0
        %v1448 = vadd.f32 %v1384, %v1447
        %v1449 = vpop.f32.mrf.mxu0
        %1450 = vdwg.mxu0
        %v1451 = vmax.f32 %v1437, 0.0
        %v1452 = vmax.f32 %v1440, 0.0
        %v1453 = vmax.f32 %v1445, 0.0
        %v1454 = vmax.f32 %v1448, 0.0
        %v1455 = vpack.c.bf16 %v1452, %v1451
        %v1456 = vpack.c.bf16 %v1454, %v1453
        %v1457 = vld [vmem:[%s9] sm:$0xf]
        %v1458 = vld [vmem:[%s9 + $0x4] sm:$0x3]
        %v1459 = vld [vmem:[%s10] sm:$0x1]
        %v1461 = vlaneseq
        %v1462 = vshrl.u32 %v1461, 7
        %v1463 = vsub.s32 0, %v1462
        %v1464 = vrot.slane %v1459, %v1463
        %v1468 = vunpack.c.l.b16 %v1457
        %v1469 = vunpack.c.l.b16 %v1458
        %v1470 = vpack.c.b16 %v1469, %v1468
        %v1472 = vsel %vm1391, %v1455, 0
        %v1475 = vsel %vm1391, %v1456, 0
        %v1478 = vsel %vm1398, %v1470, 0
        %1480 = vmatprep.subr.bf16.mxu0 0
        %1481 = vmatpush1.bf16.msra.mxu0 0
        %1482 = vmatprep.subr.bf16.mxu0 0
        %1483 = vmatpush1.bf16.msra.mxu0 0
        %1484 = vmatprep.subr.bf16.mxu0 0
        %1485 = vmatpush1.bf16.msra.mxu0 0
        %1486 = vmatprep.subr.bf16.mxu0 0
        %1487 = vmatpush1.bf16.msra.mxu0 0
        %1488 = vmatprep.subr.bf16.mxu0 0
        %1489 = vmatpush1.bf16.msra.mxu0 0
        %1490 = vmatprep.subr.bf16.mxu0 0
        %1491 = vmatpush1.bf16.msra.mxu0 0
        %1492 = vmatprep.subr.bf16.mxu0 0
        %1493 = vmatpush1.bf16.msra.mxu0 0
        %1494 = vmatprep.subr.bf16.mxu0 0
        %1495 = vmatpush1.bf16.msra.mxu0 %v1478
        %1496 = vmatprep.subr.bf16.mxu0 0
        %1497 = vmatpush2.bf16.msra.mxu0 0
        %1498 = vmatprep.subr.bf16.mxu0 0
        %1499 = vmatpush2.bf16.msra.mxu0 0
        %1500 = vmatprep.subr.bf16.mxu0 0
        %1501 = vmatpush2.bf16.msra.mxu0 0
        %1502 = vmatprep.subr.bf16.mxu0 0
        %1503 = vmatpush2.bf16.msra.mxu0 0
        %1504 = vmatprep.subr.bf16.mxu0 0
        %1505 = vmatpush2.bf16.msra.mxu0 0
        %1506 = vmatprep.subr.bf16.mxu0 0
        %1507 = vmatpush2.bf16.msra.mxu0 0
        %1508 = vmatprep.subr.bf16.mxu0 0
        %1509 = vmatpush2.bf16.msra.mxu0 0
        %1510 = vmatprep.subr.bf16.mxu0 0
        %1511 = vmatpush2.bf16.msra.mxu0 0
        %1512 = vmatprep.mubr.bf16.mxu0 0
        %1513 = vmatmul.mubr.bf16.gmra.mxu0 %v1472
        %v1514 = vpop.f32.mrf.mxu0
        %v1515 = vadd.f32 %v1464, %v1514
        %v1516 = vpop.f32.mrf.mxu0
        %v1517 = vpop.f32.mrf.mxu0
        %v1518 = vadd.f32 %v1464, %v1517
        %v1519 = vpop.f32.mrf.mxu0
        %1520 = vmatprep.mubr.bf16.mxu0 0
        %1521 = vmatmul.mubr.bf16.gmra.mxu0 %v1475
        %v1522 = vpop.f32.mrf.mxu0
        %v1523 = vadd.f32 %v1464, %v1522
        %v1524 = vpop.f32.mrf.mxu0
        %v1525 = vpop.f32.mrf.mxu0
        %v1526 = vadd.f32 %v1464, %v1525
        %v1527 = vpop.f32.mrf.mxu0
        %1528 = vdwg.mxu0
        %v1529 = vmax.f32 %v1515, 0.0
        %v1530 = vmax.f32 %v1518, 0.0
        %v1531 = vmax.f32 %v1523, 0.0
        %v1532 = vmax.f32 %v1526, 0.0
        %v1533 = vpack.c.bf16 %v1530, %v1529
        %v1534 = vpack.c.bf16 %v1532, %v1531
        %v1535 = vld [vmem:[%s11] sm:$0xf]
        %v1536 = vld [vmem:[%s11 + $0x4] sm:$0xf]
        %v1537 = vld [vmem:[%s11 + $0x8] sm:$0xf]
        %v1538 = vld [vmem:[%s11 + $0xc] sm:$0xf]
        %v1539 = vld [vmem:[%s11 + $0x10] sm:$0xf]
        %v1540 = vld [vmem:[%s11 + $0x14] sm:$0xf]
        %v1541 = vld [vmem:[%s11 + $0x18] sm:$0xf]
        %v1542 = vld [vmem:[%s11 + $0x1c] sm:$0xf]
        %v1543 = vld [vmem:[%s12] sm:$0x1]
        %v1545 = vlaneseq
        %v1546 = vshrl.u32 %v1545, 7
        %v1547 = vsub.s32 0, %v1546
        %v1548 = vrot.slane %v1543, %v1547
        %v1558 = vunpack.c.l.b16 %v1535
        %v1559 = vunpack.c.l.b16 %v1536
        %v1560 = vunpack.c.l.b16 %v1537
        %v1561 = vunpack.c.l.b16 %v1538
        %v1562 = vunpack.c.l.b16 %v1539
        %v1563 = vunpack.c.l.b16 %v1540
        %v1564 = vunpack.c.l.b16 %v1541
        %v1565 = vunpack.c.l.b16 %v1542
        %v1566 = vpack.c.b16 %v1559, %v1558
        %v1567 = vpack.c.b16 %v1561, %v1560
        %v1568 = vpack.c.b16 %v1563, %v1562
        %v1569 = vpack.c.b16 %v1565, %v1564
        %v1575 = vsel %vm1315, %v1533, 0
        %v1578 = vsel %vm1315, %v1534, 0
        %1580 = vmatprep.subr.bf16.mxu0 0
        %1581 = vmatpush1.bf16.msra.mxu0 0
        %1582 = vmatprep.subr.bf16.mxu0 0
        %1583 = vmatpush1.bf16.msra.mxu0 0
        %1584 = vmatprep.subr.bf16.mxu0 0
        %1585 = vmatpush1.bf16.msra.mxu0 0
        %1586 = vmatprep.subr.bf16.mxu0 0
        %1587 = vmatpush1.bf16.msra.mxu0 0
        %1588 = vmatprep.subr.bf16.mxu0 0
        %1589 = vmatpush1.bf16.msra.mxu0 %v1569
        %1590 = vmatprep.subr.bf16.mxu0 0
        %1591 = vmatpush1.bf16.msra.mxu0 %v1568
        %1592 = vmatprep.subr.bf16.mxu0 0
        %1593 = vmatpush1.bf16.msra.mxu0 %v1567
        %1594 = vmatprep.subr.bf16.mxu0 0
        %1595 = vmatpush1.bf16.msra.mxu0 %v1566
        %1596 = vmatprep.subr.bf16.mxu0 0
        %1597 = vmatpush2.bf16.msra.mxu0 0
        %1598 = vmatprep.subr.bf16.mxu0 0
        %1599 = vmatpush2.bf16.msra.mxu0 0
        %1600 = vmatprep.subr.bf16.mxu0 0
        %1601 = vmatpush2.bf16.msra.mxu0 0
        %1602 = vmatprep.subr.bf16.mxu0 0
        %1603 = vmatpush2.bf16.msra.mxu0 0
        %1604 = vmatprep.subr.bf16.mxu0 0
        %1605 = vmatpush2.bf16.msra.mxu0 0
        %1606 = vmatprep.subr.bf16.mxu0 0
        %1607 = vmatpush2.bf16.msra.mxu0 0
        %1608 = vmatprep.subr.bf16.mxu0 0
        %1609 = vmatpush2.bf16.msra.mxu0 0
        %1610 = vmatprep.subr.bf16.mxu0 0
        %1611 = vmatpush2.bf16.msra.mxu0 0
        %1612 = vmatprep.mubr.bf16.mxu0 0
        %1613 = vmatmul.mubr.bf16.gmra.mxu0 %v1575
        %v1614 = vpop.f32.mrf.mxu0
        %v1615 = vadd.f32 %v1548, %v1614
        %v1616 = vpop.f32.mrf.mxu0
        %v1617 = vpop.f32.mrf.mxu0
        %v1618 = vadd.f32 %v1548, %v1617
        %v1619 = vpop.f32.mrf.mxu0
        %1620 = vmatprep.mubr.bf16.mxu0 0
        %1621 = vmatmul.mubr.bf16.gmra.mxu0 %v1578
        %v1622 = vpop.f32.mrf.mxu0
        %v1623 = vadd.f32 %v1548, %v1622
        %v1624 = vpop.f32.mrf.mxu0
        %v1625 = vpop.f32.mrf.mxu0
        %v1626 = vadd.f32 %v1548, %v1625
        %v1627 = vpop.f32.mrf.mxu0
        %1628 = vdwg.mxu0
        %v1629 = vmax.f32 %v1615, 0.0
        %v1630 = vmax.f32 %v1618, 0.0
        %v1631 = vmax.f32 %v1623, 0.0
        %v1632 = vmax.f32 %v1626, 0.0
        %v1633 = vpack.c.bf16 %v1630, %v1629
        %v1634 = vpack.c.bf16 %v1632, %v1631
        %v1635 = vld [vmem:[%s13] sm:$0xff]
        %v1636 = vld [vmem:[%s13 + $0x8] sm:$0xff]
        %v1637 = vld [vmem:[%s13 + $0x10] sm:$0xff]
        %v1638 = vld [vmem:[%s13 + $0x18] sm:$0xf]
        %v1639 = vld [vmem:[%s13 + $0x1c] sm:$0xff]
        %v1640 = vld [vmem:[%s13 + $0x24] sm:$0xff]
        %v1641 = vld [vmem:[%s13 + $0x2c] sm:$0xff]
        %v1642 = vld [vmem:[%s13 + $0x34] sm:$0xf]
        %v1643 = vld [vmem:[%s13 + $0x38] sm:$0xff]
        %v1644 = vld [vmem:[%s13 + $0x40] sm:$0xff]
        %v1645 = vld [vmem:[%s13 + $0x48] sm:$0xff]
        %v1646 = vld [vmem:[%s13 + $0x50] sm:$0xf]
        %v1647 = vld [vmem:[%s13 + $0x54] sm:$0xff]
        %v1648 = vld [vmem:[%s13 + $0x5c] sm:$0xff]
        %v1649 = vld [vmem:[%s13 + $0x64] sm:$0xff]
        %v1650 = vld [vmem:[%s13 + $0x6c] sm:$0xf]
        %v1651 = vld [vmem:[%s13 + $0x70] sm:$0xff]
        %v1652 = vld [vmem:[%s13 + $0x78] sm:$0xff]
        %v1653 = vld [vmem:[%s13 + $0x80] sm:$0xff]
        %v1654 = vld [vmem:[%s13 + $0x88] sm:$0xf]
        %v1655 = vld [vmem:[%s13 + $0x8c] sm:$0xff]
        %v1656 = vld [vmem:[%s13 + $0x94] sm:$0xff]
        %v1657 = vld [vmem:[%s13 + $0x9c] sm:$0xff]
        %v1658 = vld [vmem:[%s13 + $0xa4] sm:$0xf]
        %v1659 = vld [vmem:[%s13 + $0xa8] sm:$0xff]
        %v1660 = vld [vmem:[%s13 + $0xb0] sm:$0xff]
        %v1661 = vld [vmem:[%s13 + $0xb8] sm:$0xff]
        %v1662 = vld [vmem:[%s13 + $0xc0] sm:$0xf]
        %v1663 = vld [vmem:[%s13 + $0xc4] sm:$0xff]
        %v1664 = vld [vmem:[%s13 + $0xcc] sm:$0xff]
        %v1665 = vld [vmem:[%s13 + $0xd4] sm:$0xff]
        %v1666 = vld [vmem:[%s13 + $0xdc] sm:$0xf]
        %v1667 = vld [vmem:[%s13 + $0xe0] sm:$0xff]
        %v1668 = vld [vmem:[%s13 + $0xe8] sm:$0xff]
        %v1669 = vld [vmem:[%s13 + $0xf0] sm:$0xff]
        %v1670 = vld [vmem:[%s13 + $0xf8] sm:$0xf]
        %v1671 = vld [vmem:[%s13 + $0xfc] sm:$0xff]
        %v1672 = vld [vmem:[%s13 + $0x104] sm:$0xff]
        %v1673 = vld [vmem:[%s13 + $0x10c] sm:$0xff]
        %v1674 = vld [vmem:[%s13 + $0x114] sm:$0xf]
        %v1675 = vld [vmem:[%s13 + $0x118] sm:$0xff]
        %v1676 = vld [vmem:[%s13 + $0x120] sm:$0xff]
        %v1677 = vld [vmem:[%s13 + $0x128] sm:$0xff]
        %v1678 = vld [vmem:[%s13 + $0x130] sm:$0xf]
        %v1679 = vld [vmem:[%s13 + $0x134] sm:$0xff]
        %v1680 = vld [vmem:[%s13 + $0x13c] sm:$0xff]
        %v1681 = vld [vmem:[%s13 + $0x144] sm:$0xff]
        %v1682 = vld [vmem:[%s13 + $0x14c] sm:$0xf]
        %v1683 = vld [vmem:[%s13 + $0x150] sm:$0xff]
        %v1684 = vld [vmem:[%s13 + $0x158] sm:$0xff]
        %v1685 = vld [vmem:[%s13 + $0x160] sm:$0xff]
        %v1686 = vld [vmem:[%s13 + $0x168] sm:$0xf]
        %v1687 = vld [vmem:[%s13 + $0x16c] sm:$0xff]
        %v1688 = vld [vmem:[%s13 + $0x174] sm:$0xff]
        %v1689 = vld [vmem:[%s13 + $0x17c] sm:$0xff]
        %v1690 = vld [vmem:[%s13 + $0x184] sm:$0xf]
        %v1691 = vld [vmem:[%s13 + $0x188] sm:$0xff]
        %v1692 = vld [vmem:[%s13 + $0x190] sm:$0xff]
        %v1693 = vld [vmem:[%s13 + $0x198] sm:$0xff]
        %v1694 = vld [vmem:[%s13 + $0x1a0] sm:$0xf]
        %v1695 = vld [vmem:[%s13 + $0x1a4] sm:$0xff]
        %v1696 = vld [vmem:[%s13 + $0x1ac] sm:$0xff]
        %v1697 = vld [vmem:[%s13 + $0x1b4] sm:$0xff]
        %v1698 = vld [vmem:[%s13 + $0x1bc] sm:$0xf]
        %v1699 = vld [vmem:[%s14] sm:$0x7f]
        %v1701 = vlaneseq
        %v1702 = vshrl.u32 %v1701, 7
        %v1703 = vsub.s32 0, %v1702
        %v1704 = vrot.slane %v1699, %v1703
        %v1705 = vlaneseq
        %v1706 = vshrl.u32 %v1705, 7
        %v1707 = vsub.s32 1, %v1706
        %v1708 = vrot.slane %v1699, %v1707
        %v1709 = vlaneseq
        %v1710 = vshrl.u32 %v1709, 7
        %v1711 = vsub.s32 2, %v1710
        %v1712 = vrot.slane %v1699, %v1711
        %v1713 = vlaneseq
        %v1714 = vshrl.u32 %v1713, 7
        %v1715 = vsub.s32 3, %v1714
        %v1716 = vrot.slane %v1699, %v1715
        %v1717 = vlaneseq
        %v1718 = vshrl.u32 %v1717, 7
        %v1719 = vsub.s32 4, %v1718
        %v1720 = vrot.slane %v1699, %v1719
        %v1721 = vlaneseq
        %v1722 = vshrl.u32 %v1721, 7
        %v1723 = vsub.s32 5, %v1722
        %v1724 = vrot.slane %v1699, %v1723
        %v1725 = vlaneseq
        %v1726 = vshrl.u32 %v1725, 7
        %v1727 = vsub.s32 6, %v1726
        %v1728 = vrot.slane %v1699, %v1727
        %v1800 = vunpack.c.l.b16 %v1635
        %v1801 = vunpack.c.h.b16 %v1635
        %v1802 = vunpack.c.l.b16 %v1636
        %v1803 = vunpack.c.h.b16 %v1636
        %v1804 = vunpack.c.l.b16 %v1637
        %v1805 = vunpack.c.h.b16 %v1637
        %v1806 = vunpack.c.l.b16 %v1638
        %v1807 = vunpack.c.l.b16 %v1639
        %v1808 = vunpack.c.h.b16 %v1639
        %v1809 = vunpack.c.l.b16 %v1640
        %v1810 = vunpack.c.h.b16 %v1640
        %v1811 = vunpack.c.l.b16 %v1641
        %v1812 = vunpack.c.h.b16 %v1641
        %v1813 = vunpack.c.l.b16 %v1642
        %v1814 = vunpack.c.l.b16 %v1643
        %v1815 = vunpack.c.h.b16 %v1643
        %v1816 = vunpack.c.l.b16 %v1644
        %v1817 = vunpack.c.h.b16 %v1644
        %v1818 = vunpack.c.l.b16 %v1645
        %v1819 = vunpack.c.h.b16 %v1645
        %v1820 = vunpack.c.l.b16 %v1646
        %v1821 = vunpack.c.l.b16 %v1647
        %v1822 = vunpack.c.h.b16 %v1647
        %v1823 = vunpack.c.l.b16 %v1648
        %v1824 = vunpack.c.h.b16 %v1648
        %v1825 = vunpack.c.l.b16 %v1649
        %v1826 = vunpack.c.h.b16 %v1649
        %v1827 = vunpack.c.l.b16 %v1650
        %v1828 = vunpack.c.l.b16 %v1651
        %v1829 = vunpack.c.h.b16 %v1651
        %v1830 = vunpack.c.l.b16 %v1652
        %v1831 = vunpack.c.h.b16 %v1652
        %v1832 = vunpack.c.l.b16 %v1653
        %v1833 = vunpack.c.h.b16 %v1653
        %v1834 = vunpack.c.l.b16 %v1654
        %v1835 = vunpack.c.l.b16 %v1655
        %v1836 = vunpack.c.h.b16 %v1655
        %v1837 = vunpack.c.l.b16 %v1656
        %v1838 = vunpack.c.h.b16 %v1656
        %v1839 = vunpack.c.l.b16 %v1657
        %v1840 = vunpack.c.h.b16 %v1657
        %v1841 = vunpack.c.l.b16 %v1658
        %v1842 = vunpack.c.l.b16 %v1659
        %v1843 = vunpack.c.h.b16 %v1659
        %v1844 = vunpack.c.l.b16 %v1660
        %v1845 = vunpack.c.h.b16 %v1660
        %v1846 = vunpack.c.l.b16 %v1661
        %v1847 = vunpack.c.h.b16 %v1661
        %v1848 = vunpack.c.l.b16 %v1662
        %v1849 = vunpack.c.l.b16 %v1663
        %v1850 = vunpack.c.h.b16 %v1663
        %v1851 = vunpack.c.l.b16 %v1664
        %v1852 = vunpack.c.h.b16 %v1664
        %v1853 = vunpack.c.l.b16 %v1665
        %v1854 = vunpack.c.h.b16 %v1665
        %v1855 = vunpack.c.l.b16 %v1666
        %v1856 = vunpack.c.l.b16 %v1667
        %v1857 = vunpack.c.h.b16 %v1667
        %v1858 = vunpack.c.l.b16 %v1668
        %v1859 = vunpack.c.h.b16 %v1668
        %v1860 = vunpack.c.l.b16 %v1669
        %v1861 = vunpack.c.h.b16 %v1669
        %v1862 = vunpack.c.l.b16 %v1670
        %v1863 = vunpack.c.l.b16 %v1671
        %v1864 = vunpack.c.h.b16 %v1671
        %v1865 = vunpack.c.l.b16 %v1672
        %v1866 = vunpack.c.h.b16 %v1672
        %v1867 = vunpack.c.l.b16 %v1673
        %v1868 = vunpack.c.h.b16 %v1673
        %v1869 = vunpack.c.l.b16 %v1674
        %v1870 = vunpack.c.l.b16 %v1675
        %v1871 = vunpack.c.h.b16 %v1675
        %v1872 = vunpack.c.l.b16 %v1676
        %v1873 = vunpack.c.h.b16 %v1676
        %v1874 = vunpack.c.l.b16 %v1677
        %v1875 = vunpack.c.h.b16 %v1677
        %v1876 = vunpack.c.l.b16 %v1678
        %v1877 = vunpack.c.l.b16 %v1679
        %v1878 = vunpack.c.h.b16 %v1679
        %v1879 = vunpack.c.l.b16 %v1680
        %v1880 = vunpack.c.h.b16 %v1680
        %v1881 = vunpack.c.l.b16 %v1681
        %v1882 = vunpack.c.h.b16 %v1681
        %v1883 = vunpack.c.l.b16 %v1682
        %v1884 = vunpack.c.l.b16 %v1683
        %v1885 = vunpack.c.h.b16 %v1683
        %v1886 = vunpack.c.l.b16 %v1684
        %v1887 = vunpack.c.h.b16 %v1684
        %v1888 = vunpack.c.l.b16 %v1685
        %v1889 = vunpack.c.h.b16 %v1685
        %v1890 = vunpack.c.l.b16 %v1686
        %v1891 = vunpack.c.l.b16 %v1687
        %v1892 = vunpack.c.h.b16 %v1687
        %v1893 = vunpack.c.l.b16 %v1688
        %v1894 = vunpack.c.h.b16 %v1688
        %v1895 = vunpack.c.l.b16 %v1689
        %v1896 = vunpack.c.h.b16 %v1689
        %v1897 = vunpack.c.l.b16 %v1690
        %v1898 = vunpack.c.l.b16 %v1691
        %v1899 = vunpack.c.h.b16 %v1691
        %v1900 = vunpack.c.l.b16 %v1692
        %v1901 = vunpack.c.h.b16 %v1692
        %v1902 = vunpack.c.l.b16 %v1693
        %v1903 = vunpack.c.h.b16 %v1693
        %v1904 = vunpack.c.l.b16 %v1694
        %v1905 = vunpack.c.l.b16 %v1695
        %v1906 = vunpack.c.h.b16 %v1695
        %v1907 = vunpack.c.l.b16 %v1696
        %v1908 = vunpack.c.h.b16 %v1696
        %v1909 = vunpack.c.l.b16 %v1697
        %v1910 = vunpack.c.h.b16 %v1697
        %v1911 = vunpack.c.l.b16 %v1698
        %v1912 = vpack.c.b16 %v1807, %v1800
        %v1913 = vpack.c.b16 %v1808, %v1801
        %v1914 = vpack.c.b16 %v1809, %v1802
        %v1915 = vpack.c.b16 %v1810, %v1803
        %v1916 = vpack.c.b16 %v1811, %v1804
        %v1917 = vpack.c.b16 %v1812, %v1805
        %v1918 = vpack.c.b16 %v1813, %v1806
        %v1919 = vpack.c.b16 %v1821, %v1814
        %v1920 = vpack.c.b16 %v1822, %v1815
        %v1921 = vpack.c.b16 %v1823, %v1816
        %v1922 = vpack.c.b16 %v1824, %v1817
        %v1923 = vpack.c.b16 %v1825, %v1818
        %v1924 = vpack.c.b16 %v1826, %v1819
        %v1925 = vpack.c.b16 %v1827, %v1820
        %v1926 = vpack.c.b16 %v1835, %v1828
        %v1927 = vpack.c.b16 %v1836, %v1829
        %v1928 = vpack.c.b16 %v1837, %v1830
        %v1929 = vpack.c.b16 %v1838, %v1831
        %v1930 = vpack.c.b16 %v1839, %v1832
        %v1931 = vpack.c.b16 %v1840, %v1833
        %v1932 = vpack.c.b16 %v1841, %v1834
        %v1933 = vpack.c.b16 %v1849, %v1842
        %v1934 = vpack.c.b16 %v1850, %v1843
        %v1935 = vpack.c.b16 %v1851, %v1844
        %v1936 = vpack.c.b16 %v1852, %v1845
        %v1937 = vpack.c.b16 %v1853, %v1846
        %v1938 = vpack.c.b16 %v1854, %v1847
        %v1939 = vpack.c.b16 %v1855, %v1848
        %v1940 = vpack.c.b16 %v1863, %v1856
        %v1941 = vpack.c.b16 %v1864, %v1857
        %v1942 = vpack.c.b16 %v1865, %v1858
        %v1943 = vpack.c.b16 %v1866, %v1859
        %v1944 = vpack.c.b16 %v1867, %v1860
        %v1945 = vpack.c.b16 %v1868, %v1861
        %v1946 = vpack.c.b16 %v1869, %v1862
        %v1947 = vpack.c.b16 %v1877, %v1870
        %v1948 = vpack.c.b16 %v1878, %v1871
        %v1949 = vpack.c.b16 %v1879, %v1872
        %v1950 = vpack.c.b16 %v1880, %v1873
        %v1951 = vpack.c.b16 %v1881, %v1874
        %v1952 = vpack.c.b16 %v1882, %v1875
        %v1953 = vpack.c.b16 %v1883, %v1876
        %v1954 = vpack.c.b16 %v1891, %v1884
        %v1955 = vpack.c.b16 %v1892, %v1885
        %v1956 = vpack.c.b16 %v1893, %v1886
        %v1957 = vpack.c.b16 %v1894, %v1887
        %v1958 = vpack.c.b16 %v1895, %v1888
        %v1959 = vpack.c.b16 %v1896, %v1889
        %v1960 = vpack.c.b16 %v1897, %v1890
        %v1961 = vpack.c.b16 %v1905, %v1898
        %v1962 = vpack.c.b16 %v1906, %v1899
        %v1963 = vpack.c.b16 %v1907, %v1900
        %v1964 = vpack.c.b16 %v1908, %v1901
        %v1965 = vpack.c.b16 %v1909, %v1902
        %v1966 = vpack.c.b16 %v1910, %v1903
        %v1967 = vpack.c.b16 %v1911, %v1904
        %2024 = vmatprep.subr.bf16.mxu0 %v1962
        %2025 = vmatpush1.bf16.msra.mxu0 %v1961
        %2026 = vmatprep.subr.bf16.mxu0 %v1955
        %2027 = vmatpush1.bf16.msra.mxu0 %v1954
        %2028 = vmatprep.subr.bf16.mxu0 %v1948
        %2029 = vmatpush1.bf16.msra.mxu0 %v1947
        %2030 = vmatprep.subr.bf16.mxu0 %v1941
        %2031 = vmatpush1.bf16.msra.mxu0 %v1940
        %2032 = vmatprep.subr.bf16.mxu0 %v1934
        %2033 = vmatpush1.bf16.msra.mxu0 %v1933
        %2034 = vmatprep.subr.bf16.mxu0 %v1927
        %2035 = vmatpush1.bf16.msra.mxu0 %v1926
        %2036 = vmatprep.subr.bf16.mxu0 %v1920
        %2037 = vmatpush1.bf16.msra.mxu0 %v1919
        %2038 = vmatprep.subr.bf16.mxu0 %v1913
        %2039 = vmatpush1.bf16.msra.mxu0 %v1912
        %2040 = vmatprep.subr.bf16.mxu0 0
        %2041 = vmatpush2.bf16.msra.mxu0 0
        %2042 = vmatprep.subr.bf16.mxu0 0
        %2043 = vmatpush2.bf16.msra.mxu0 0
        %2044 = vmatprep.subr.bf16.mxu0 0
        %2045 = vmatpush2.bf16.msra.mxu0 0
        %2046 = vmatprep.subr.bf16.mxu0 0
        %2047 = vmatpush2.bf16.msra.mxu0 0
        %2048 = vmatprep.subr.bf16.mxu0 0
        %2049 = vmatpush2.bf16.msra.mxu0 0
        %2050 = vmatprep.subr.bf16.mxu0 0
        %2051 = vmatpush2.bf16.msra.mxu0 0
        %2052 = vmatprep.subr.bf16.mxu0 0
        %2053 = vmatpush2.bf16.msra.mxu0 0
        %2054 = vmatprep.subr.bf16.mxu0 0
        %2055 = vmatpush2.bf16.msra.mxu0 0
        %2056 = vmatprep.mubr.bf16.mxu0 0
        %2057 = vmatmul.mubr.bf16.gmra.mxu0 %v1633
        %v2058 = vpop.f32.mrf.mxu0
        %v2059 = vadd.f32 %v1704, %v2058
        %v2060 = vpop.f32.mrf.mxu0
        %v2061 = vadd.f32 %v1708, %v2060
        %v2062 = vpop.f32.mrf.mxu0
        %v2063 = vadd.f32 %v1704, %v2062
        %v2064 = vpop.f32.mrf.mxu0
        %v2065 = vadd.f32 %v1708, %v2064
        %2066 = vmatprep.mubr.bf16.mxu0 0
        %2067 = vmatmul.mubr.bf16.gmra.mxu0 %v1634
        %v2068 = vpop.f32.mrf.mxu0
        %v2069 = vadd.f32 %v1704, %v2068
        %v2070 = vpop.f32.mrf.mxu0
        %v2071 = vadd.f32 %v1708, %v2070
        %v2072 = vpop.f32.mrf.mxu0
        %v2073 = vadd.f32 %v1704, %v2072
        %v2074 = vpop.f32.mrf.mxu0
        %v2075 = vadd.f32 %v1708, %v2074
        %2076 = vdwg.mxu0
        %2077 = vmatprep.subr.bf16.mxu0 %v1964
        %2078 = vmatpush1.bf16.msra.mxu0 %v1963
        %2079 = vmatprep.subr.bf16.mxu0 %v1957
        %2080 = vmatpush1.bf16.msra.mxu0 %v1956
        %2081 = vmatprep.subr.bf16.mxu0 %v1950
        %2082 = vmatpush1.bf16.msra.mxu0 %v1949
        %2083 = vmatprep.subr.bf16.mxu0 %v1943
        %2084 = vmatpush1.bf16.msra.mxu0 %v1942
        %2085 = vmatprep.subr.bf16.mxu0 %v1936
        %2086 = vmatpush1.bf16.msra.mxu0 %v1935
        %2087 = vmatprep.subr.bf16.mxu0 %v1929
        %2088 = vmatpush1.bf16.msra.mxu0 %v1928
        %2089 = vmatprep.subr.bf16.mxu0 %v1922
        %2090 = vmatpush1.bf16.msra.mxu0 %v1921
        %2091 = vmatprep.subr.bf16.mxu0 %v1915
        %2092 = vmatpush1.bf16.msra.mxu0 %v1914
        %2093 = vmatprep.subr.bf16.mxu0 0
        %2094 = vmatpush2.bf16.msra.mxu0 0
        %2095 = vmatprep.subr.bf16.mxu0 0
        %2096 = vmatpush2.bf16.msra.mxu0 0
        %2097 = vmatprep.subr.bf16.mxu0 0
        %2098 = vmatpush2.bf16.msra.mxu0 0
        %2099 = vmatprep.subr.bf16.mxu0 0
        %2100 = vmatpush2.bf16.msra.mxu0 0
        %2101 = vmatprep.subr.bf16.mxu0 0
        %2102 = vmatpush2.bf16.msra.mxu0 0
        %2103 = vmatprep.subr.bf16.mxu0 0
        %2104 = vmatpush2.bf16.msra.mxu0 0
        %2105 = vmatprep.subr.bf16.mxu0 0
        %2106 = vmatpush2.bf16.msra.mxu0 0
        %2107 = vmatprep.subr.bf16.mxu0 0
        %2108 = vmatpush2.bf16.msra.mxu0 0
        %2109 = vmatprep.mubr.bf16.mxu0 0
        %2110 = vmatmul.mubr.bf16.gmra.mxu0 %v1633
        %v2111 = vpop.f32.mrf.mxu0
        %v2112 = vadd.f32 %v1712, %v2111
        %v2113 = vpop.f32.mrf.mxu0
        %v2114 = vadd.f32 %v1716, %v2113
        %v2115 = vpop.f32.mrf.mxu0
        %v2116 = vadd.f32 %v1712, %v2115
        %v2117 = vpop.f32.mrf.mxu0
        %v2118 = vadd.f32 %v1716, %v2117
        %2119 = vmatprep.mubr.bf16.mxu0 0
        %2120 = vmatmul.mubr.bf16.gmra.mxu0 %v1634
        %v2121 = vpop.f32.mrf.mxu0
        %v2122 = vadd.f32 %v1712, %v2121
        %v2123 = vpop.f32.mrf.mxu0
        %v2124 = vadd.f32 %v1716, %v2123
        %v2125 = vpop.f32.mrf.mxu0
        %v2126 = vadd.f32 %v1712, %v2125
        %v2127 = vpop.f32.mrf.mxu0
        %v2128 = vadd.f32 %v1716, %v2127
        %2129 = vdwg.mxu0
        %2130 = vmatprep.subr.bf16.mxu0 %v1966
        %2131 = vmatpush1.bf16.msra.mxu0 %v1965
        %2132 = vmatprep.subr.bf16.mxu0 %v1959
        %2133 = vmatpush1.bf16.msra.mxu0 %v1958
        %2134 = vmatprep.subr.bf16.mxu0 %v1952
        %2135 = vmatpush1.bf16.msra.mxu0 %v1951
        %2136 = vmatprep.subr.bf16.mxu0 %v1945
        %2137 = vmatpush1.bf16.msra.mxu0 %v1944
        %2138 = vmatprep.subr.bf16.mxu0 %v1938
        %2139 = vmatpush1.bf16.msra.mxu0 %v1937
        %2140 = vmatprep.subr.bf16.mxu0 %v1931
        %2141 = vmatpush1.bf16.msra.mxu0 %v1930
        %2142 = vmatprep.subr.bf16.mxu0 %v1924
        %2143 = vmatpush1.bf16.msra.mxu0 %v1923
        %2144 = vmatprep.subr.bf16.mxu0 %v1917
        %2145 = vmatpush1.bf16.msra.mxu0 %v1916
        %2146 = vmatprep.subr.bf16.mxu0 0
        %2147 = vmatpush2.bf16.msra.mxu0 0
        %2148 = vmatprep.subr.bf16.mxu0 0
        %2149 = vmatpush2.bf16.msra.mxu0 0
        %2150 = vmatprep.subr.bf16.mxu0 0
        %2151 = vmatpush2.bf16.msra.mxu0 0
        %2152 = vmatprep.subr.bf16.mxu0 0
        %2153 = vmatpush2.bf16.msra.mxu0 0
        %2154 = vmatprep.subr.bf16.mxu0 0
        %2155 = vmatpush2.bf16.msra.mxu0 0
        %2156 = vmatprep.subr.bf16.mxu0 0
        %2157 = vmatpush2.bf16.msra.mxu0 0
        %2158 = vmatprep.subr.bf16.mxu0 0
        %2159 = vmatpush2.bf16.msra.mxu0 0
        %2160 = vmatprep.subr.bf16.mxu0 0
        %2161 = vmatpush2.bf16.msra.mxu0 0
        %2162 = vmatprep.mubr.bf16.mxu0 0
        %2163 = vmatmul.mubr.bf16.gmra.mxu0 %v1633
        %v2164 = vpop.f32.mrf.mxu0
        %v2165 = vadd.f32 %v1720, %v2164
        %v2166 = vpop.f32.mrf.mxu0
        %v2167 = vadd.f32 %v1724, %v2166
        %v2168 = vpop.f32.mrf.mxu0
        %v2169 = vadd.f32 %v1720, %v2168
        %v2170 = vpop.f32.mrf.mxu0
        %v2171 = vadd.f32 %v1724, %v2170
        %2172 = vmatprep.mubr.bf16.mxu0 0
        %2173 = vmatmul.mubr.bf16.gmra.mxu0 %v1634
        %v2174 = vpop.f32.mrf.mxu0
        %v2175 = vadd.f32 %v1720, %v2174
        %v2176 = vpop.f32.mrf.mxu0
        %v2177 = vadd.f32 %v1724, %v2176
        %v2178 = vpop.f32.mrf.mxu0
        %v2179 = vadd.f32 %v1720, %v2178
        %v2180 = vpop.f32.mrf.mxu0
        %v2181 = vadd.f32 %v1724, %v2180
        %2182 = vdwg.mxu0
        %2183 = vmatprep.subr.bf16.mxu0 0
        %2184 = vmatpush1.bf16.msra.mxu0 %v1967
        %2185 = vmatprep.subr.bf16.mxu0 0
        %2186 = vmatpush1.bf16.msra.mxu0 %v1960
        %2187 = vmatprep.subr.bf16.mxu0 0
        %2188 = vmatpush1.bf16.msra.mxu0 %v1953
        %2189 = vmatprep.subr.bf16.mxu0 0
        %2190 = vmatpush1.bf16.msra.mxu0 %v1946
        %2191 = vmatprep.subr.bf16.mxu0 0
        %2192 = vmatpush1.bf16.msra.mxu0 %v1939
        %2193 = vmatprep.subr.bf16.mxu0 0
        %2194 = vmatpush1.bf16.msra.mxu0 %v1932
        %2195 = vmatprep.subr.bf16.mxu0 0
        %2196 = vmatpush1.bf16.msra.mxu0 %v1925
        %2197 = vmatprep.subr.bf16.mxu0 0
        %2198 = vmatpush1.bf16.msra.mxu0 %v1918
        %2199 = vmatprep.subr.bf16.mxu0 0
        %2200 = vmatpush2.bf16.msra.mxu0 0
        %2201 = vmatprep.subr.bf16.mxu0 0
        %2202 = vmatpush2.bf16.msra.mxu0 0
        %2203 = vmatprep.subr.bf16.mxu0 0
        %2204 = vmatpush2.bf16.msra.mxu0 0
        %2205 = vmatprep.subr.bf16.mxu0 0
        %2206 = vmatpush2.bf16.msra.mxu0 0
        %2207 = vmatprep.subr.bf16.mxu0 0
        %2208 = vmatpush2.bf16.msra.mxu0 0
        %2209 = vmatprep.subr.bf16.mxu0 0
        %2210 = vmatpush2.bf16.msra.mxu0 0
        %2211 = vmatprep.subr.bf16.mxu0 0
        %2212 = vmatpush2.bf16.msra.mxu0 0
        %2213 = vmatprep.subr.bf16.mxu0 0
        %2214 = vmatpush2.bf16.msra.mxu0 0
        %2215 = vmatprep.mubr.bf16.mxu0 0
        %2216 = vmatmul.mubr.bf16.gmra.mxu0 %v1633
        %v2217 = vpop.f32.mrf.mxu0
        %v2218 = vadd.f32 %v1728, %v2217
        %v2219 = vpop.f32.mrf.mxu0
        %v2220 = vpop.f32.mrf.mxu0
        %v2221 = vadd.f32 %v1728, %v2220
        %v2222 = vpop.f32.mrf.mxu0
        %2223 = vmatprep.mubr.bf16.mxu0 0
        %2224 = vmatmul.mubr.bf16.gmra.mxu0 %v1634
        %v2225 = vpop.f32.mrf.mxu0
        %v2226 = vadd.f32 %v1728, %v2225
        %v2227 = vpop.f32.mrf.mxu0
        %v2228 = vpop.f32.mrf.mxu0
        %v2229 = vadd.f32 %v1728, %v2228
        %v2230 = vpop.f32.mrf.mxu0
        %2231 = vdwg.mxu0
        %v2232 = vtanh.pop %v2059
        %v2233 = vtanh.pop %v2061
        %v2234 = vtanh.pop %v2112
        %v2235 = vtanh.pop %v2114
        %v2236 = vtanh.pop %v2165
        %v2237 = vtanh.pop %v2167
        %v2238 = vtanh.pop %v2218
        %v2239 = vtanh.pop %v2063
        %v2240 = vtanh.pop %v2065
        %v2241 = vtanh.pop %v2116
        %v2242 = vtanh.pop %v2118
        %v2243 = vtanh.pop %v2169
        %v2244 = vtanh.pop %v2171
        %v2245 = vtanh.pop %v2221
        %v2246 = vtanh.pop %v2069
        %v2247 = vtanh.pop %v2071
        %v2248 = vtanh.pop %v2122
        %v2249 = vtanh.pop %v2124
        %v2250 = vtanh.pop %v2175
        %v2251 = vtanh.pop %v2177
        %v2252 = vtanh.pop %v2226
        %v2253 = vtanh.pop %v2073
        %v2254 = vtanh.pop %v2075
        %v2255 = vtanh.pop %v2126
        %v2256 = vtanh.pop %v2128
        %v2257 = vtanh.pop %v2179
        %v2258 = vtanh.pop %v2181
        %v2259 = vtanh.pop %v2229
        %v2260 = vpack.c.bf16 %v2239, %v2232
        %v2261 = vpack.c.bf16 %v2240, %v2233
        %v2262 = vpack.c.bf16 %v2241, %v2234
        %v2263 = vpack.c.bf16 %v2242, %v2235
        %v2264 = vpack.c.bf16 %v2243, %v2236
        %v2265 = vpack.c.bf16 %v2244, %v2237
        %v2266 = vpack.c.bf16 %v2245, %v2238
        %v2267 = vpack.c.bf16 %v2253, %v2246
        %v2268 = vpack.c.bf16 %v2254, %v2247
        %v2269 = vpack.c.bf16 %v2255, %v2248
        %v2270 = vpack.c.bf16 %v2256, %v2249
        %v2271 = vpack.c.bf16 %v2257, %v2250
        %v2272 = vpack.c.bf16 %v2258, %v2251
        %v2273 = vpack.c.bf16 %v2259, %v2252
        %v2288 = vunpack.c.l.b16 %v2260
        %v2289 = vunpack.c.l.b16 %v2261
        %v2290 = vunpack.c.l.b16 %v2262
        %v2291 = vunpack.c.l.b16 %v2263
        %v2292 = vunpack.c.l.b16 %v2264
        %v2293 = vunpack.c.l.b16 %v2265
        %v2294 = vunpack.c.l.b16 %v2266
        %v2295 = vunpack.c.h.b16 %v2260
        %v2296 = vunpack.c.h.b16 %v2261
        %v2297 = vunpack.c.h.b16 %v2262
        %v2298 = vunpack.c.h.b16 %v2263
        %v2299 = vunpack.c.h.b16 %v2264
        %v2300 = vunpack.c.h.b16 %v2265
        %v2301 = vunpack.c.h.b16 %v2266
        %v2302 = vunpack.c.l.b16 %v2267
        %v2303 = vunpack.c.l.b16 %v2268
        %v2304 = vunpack.c.l.b16 %v2269
        %v2305 = vunpack.c.l.b16 %v2270
        %v2306 = vunpack.c.l.b16 %v2271
        %v2307 = vunpack.c.l.b16 %v2272
        %v2308 = vunpack.c.l.b16 %v2273
        %v2309 = vunpack.c.h.b16 %v2267
        %v2310 = vunpack.c.h.b16 %v2268
        %v2311 = vunpack.c.h.b16 %v2269
        %v2312 = vunpack.c.h.b16 %v2270
        %v2313 = vunpack.c.h.b16 %v2271
        %v2314 = vunpack.c.h.b16 %v2272
        %v2315 = vunpack.c.h.b16 %v2273
        %v2316 = vpack.c.b16 %v2289, %v2288
        %v2317 = vpack.c.b16 %v2291, %v2290
        %v2318 = vpack.c.b16 %v2293, %v2292
        %v2319 = vpack.c.b16 %v2294, %v2294
        %v2320 = vpack.c.b16 %v2296, %v2295
        %v2321 = vpack.c.b16 %v2298, %v2297
        %v2322 = vpack.c.b16 %v2300, %v2299
        %v2323 = vpack.c.b16 %v2301, %v2301
        %v2324 = vpack.c.b16 %v2303, %v2302
        %v2325 = vpack.c.b16 %v2305, %v2304
        %v2326 = vpack.c.b16 %v2307, %v2306
        %v2327 = vpack.c.b16 %v2308, %v2308
        %v2328 = vpack.c.b16 %v2310, %v2309
        %v2329 = vpack.c.b16 %v2312, %v2311
        %v2330 = vpack.c.b16 %v2314, %v2313
        %v2331 = vpack.c.b16 %v2315, %v2315
        %2348 = vst [vmem:[%s490] sm:$0xff] %v2316
        %2349 = vst [vmem:[%s490 + $0x8] sm:$0xff] %v2317
        %2350 = vst [vmem:[%s490 + $0x10] sm:$0xff] %v2318
        %vm2351 = vcmask 125952
        %2352 = vst.msk [vmem:[%s490 + $0x18] sm:$0xf] %vm2351, %v2319
        %2353 = vst [vmem:[%s490 + $0x1c] sm:$0xff] %v2320
        %2354 = vst [vmem:[%s490 + $0x24] sm:$0xff] %v2321
        %2355 = vst [vmem:[%s490 + $0x2c] sm:$0xff] %v2322
        %2356 = vst.msk [vmem:[%s490 + $0x34] sm:$0xf] %vm2351, %v2323
        %2357 = vst [vmem:[%s490 + $0x38] sm:$0xff] %v2324
        %2358 = vst [vmem:[%s490 + $0x40] sm:$0xff] %v2325
        %2359 = vst [vmem:[%s490 + $0x48] sm:$0xff] %v2326
        %2360 = vst.msk [vmem:[%s490 + $0x50] sm:$0xf] %vm2351, %v2327
        %2361 = vst [vmem:[%s490 + $0x54] sm:$0xff] %v2328
        %2362 = vst [vmem:[%s490 + $0x5c] sm:$0xff] %v2329
        %2363 = vst [vmem:[%s490 + $0x64] sm:$0xff] %v2330
        %2364 = vst.msk [vmem:[%s490 + $0x6c] sm:$0xf] %vm2351, %v2331
        %s2365 = sand.u32 %s357, 1
        %s2366 = scalar_lea.sflag [#allocation3], %s2365
        %s2367 = sand.u32 %s357, 1
        %s2368 = smul.addr %s2367, 112
        %s2369 = scalar_lea.vmem [#allocation2], %s2368
        // Predicated region
        $region81: #{tpu_custom_call.1} parent=79 // pred_check
          %p2370 = pneg %p367
        $region82: #{tpu_custom_call.1} parent=79 // pred_check_branch
          %2372 = sbr.rel (%p2370) target = $region84
        $region83: #{tpu_custom_call.1} parent=79 // pred_region
          %s2373 = smul.u32 4, %s29
          %s2375 = ssub.s32 1792, 1792
          %2376 = vsyncadd %s2366, %s2375
          %s2377 = smul.addr %s2373, 7
          %s2378 = smul.addr %s2377, 64
          %s2379 = scalar_lea.hbm %s15, %s2378
          %s2380 = sshll.u32 %s2369, 4
          %s2381 = int_to_ptr.vmem [resolvable:$true] %s2380
          %2386 = dma.vmem_to_hbm [thread:$0]  %s2381, 1792, %s2379, %s2366, 448, 448, 28
        $region84: #{tpu_custom_call.1} parent=79 // pred_fallthru
          _
      $region80: #{tpu_custom_call.1} parent=5 // pred_fallthru
        _
      %p2387 = scmp.le.s32.totalorder 2, %s24
      // Predicated region
      $region85: #{tpu_custom_call.1} parent=5 // pred_check
        %p2388 = pneg %p2387
      $region86: #{tpu_custom_call.1} parent=5 // pred_check_branch
        %2390 = sbr.rel (%p2388) target = $region88
      $region87: #{tpu_custom_call.1} parent=5 // pred_region
        %s2391 = ssub.s32 %s24, 2
        // Predicated region
        $region89: #{tpu_custom_call.1} parent=87 // pred_check
          %p2392 = pneg %p373
        $region90: #{tpu_custom_call.1} parent=87 // pred_check_branch
          %2394 = sbr.rel (%p2392) target = $region92
        $region91: #{tpu_custom_call.1} parent=87 // pred_region
          %s2395 = sand.u32 %s358, 1
          %s2396 = scalar_lea.sflag [#allocation3], %s2395
          %s2397 = sand.u32 %s358, 1
          %s2398 = smul.addr %s2397, 112
          %s2399 = scalar_lea.vmem [#allocation2], %s2398
          %2400 = dma.done %s2396, 1792
        $region92: #{tpu_custom_call.1} parent=87 // pred_fallthru
          _
      $region88: #{tpu_custom_call.1} parent=5 // pred_fallthru
        _
    $region6: #{tpu_custom_call.1} parent=1 // loop_footer
      %s28 = sadd.s32 1, %s24
    $region7: #{tpu_custom_call.1} parent=1 // loop_footer_branch
      %23 = sbr.rel target = $region3
    $region8: #{tpu_custom_call.1} parent=1 // loop_exit
      _
    %2401 = vsyncpa [#allocation3], 1
    %s2402 = scalar_lea.sflag [#allocation3], 1
    %2403 = vsyncpa %s2402, 1

</llo_original>
